<compile_context>
chip_gen: v5e
topology: v5e:2x2
jax: 0.10.0
libtpu: 0.0.40
codegen_flags: <defaults>
</compile_context>

<pallas_src>
import jax
import jax.numpy as jnp
from jax.experimental import pallas as pl
from jax.experimental.pallas import tpu as pltpu

# ---- problem sizes (small, consistent with the module's forward) ------------
B = 2                      # batch of images
IMG_C, IMG_H, IMG_W = 3, 16, 16
P = 64                     # proposals per image (real model: ~1000)
M = B * P                  # 128 rows: batch*proposals folded together
C_ROI = 16                 # RoI feature channels (real: 256)
POOL = 7                   # RoIAlign output size (real: 7)
D_RAW = C_ROI * POOL * POOL            # 784
D_PAD = 896                # fc6 K dim zero-padded to 7*128 (MXU/lane aligned)
HID = 128                  # representation size of TwoMLPHead (real: 1024)
NC = 8                     # number of classes incl. background (real: 91)
NC_PAD = 128               # class-logit matmul lane-padded to full MXU width
DETECTIONS_PER_IMG = 36
SCORE_THRESH = 0.2
NEG_INF = -1.0e30          # finite "minus infinity": exp underflows to exactly 0
TM = 128                   # rows per grid step (== M at toy size; tile M for real P / v7x)


# ---- Pallas kernel: fused box_head + class head + softmax + max-fg-score ----
def roi_heads_kernel(x_ref, w6_ref, b6_ref, w7_ref, b7_ref, wc_ref, bc_ref,
                     h7_ref, pscore_ref):
    # In-kernel f32 -> bf16 cast of the RoI features (VPU; replaces a separate
    # un-hidden XLA cast pass in the wrapper).
    x = x_ref[...].astype(jnp.bfloat16)                         # (TM, D_PAD)

    # TwoMLPHead: fc6 -> ReLU -> fc7 -> ReLU   (bf16 MXU matmuls, f32 accum)
    h6 = jnp.dot(x, w6_ref[...], preferred_element_type=jnp.float32) + b6_ref[...]
    h6 = jnp.maximum(h6, 0.0)
    h7 = jnp.dot(h6.astype(jnp.bfloat16), w7_ref[...],
                 preferred_element_type=jnp.float32) + b7_ref[...]
    h7 = jnp.maximum(h7, 0.0)
    h7_bf16 = h7.astype(jnp.bfloat16)
    h7_ref[...] = h7_bf16                                       # (TM, HID) bf16

    # FastRCNNPredictor class logits, lane-padded to NC_PAD=128 columns.
    # Padded columns have zero weights and a finite -1e30 bias -> prob exactly 0.
    logits = jnp.dot(h7_bf16, wc_ref[...],
                     preferred_element_type=jnp.float32) + bc_ref[...]   # (TM, NC_PAD)

    # Per-proposal max foreground softmax score using lane-axis reductions only:
    #   max_fg softmax = exp(max_{c>0} logit_c - m) / sum_c exp(logit_c - m)
    m = jnp.max(logits, axis=-1, keepdims=True)                          # (TM, 1)
    z = jnp.sum(jnp.exp(logits - m), axis=-1, keepdims=True)             # (TM, 1)
    lane = jax.lax.broadcasted_iota(jnp.int32, logits.shape, 1)
    fg_max = jnp.max(jnp.where(lane == 0, NEG_INF, logits),
                     axis=-1, keepdims=True)                             # (TM, 1)
    pscore = jnp.exp(fg_max - m) * pl.reciprocal(z, approx=True)         # (TM, 1)
    # Only this single column is transposed (not the 128x128 score matrix) so
    # the store stays lane-dense.
    pscore_ref[...] = jnp.transpose(pscore)                              # (1, TM)


def _cost_estimate():
    flops = 2 * M * (D_PAD * HID + HID * HID + HID * NC_PAD)
    bytes_in = (M * D_PAD * 4                                           # f32 feats
                + (D_PAD * HID + HID * HID + HID * NC_PAD) * 2          # bf16 weights
                + (HID + HID + NC_PAD) * 4)                             # f32 biases
    bytes_out = M * HID * 2 + M * 4                                     # bf16 h7 + f32 pscore
    return pl.CostEstimate(flops=flops,
                           transcendentals=M * (NC_PAD + 1),
                           bytes_accessed=bytes_in + bytes_out)


def roi_heads_pallas(feats_f32, params):
    """feats_f32: (M, D_PAD) float32; params: dict of weights/biases."""
    grid = (M // TM,)   # == (1,) at toy size; row tiles split across TCs when M grows
    grid_spec = pltpu.PrefetchScalarGridSpec(
        num_scalar_prefetch=0,
        grid=grid,
        in_specs=[
            pl.BlockSpec((TM, D_PAD), lambda i: (i, 0)),
            pl.BlockSpec((D_PAD, HID), lambda i: (0, 0)),   # weights: constant index_map
            pl.BlockSpec((1, HID), lambda i: (0, 0)),
            pl.BlockSpec((HID, HID), lambda i: (0, 0)),
            pl.BlockSpec((1, HID), lambda i: (0, 0)),
            pl.BlockSpec((HID, NC_PAD), lambda i: (0, 0)),
            pl.BlockSpec((1, NC_PAD), lambda i: (0, 0)),
        ],
        out_specs=[
            pl.BlockSpec((TM, HID), lambda i: (i, 0)),
            pl.BlockSpec((1, TM), lambda i: (0, i)),
        ],
    )

    out_shape = (
        jax.ShapeDtypeStruct((M, HID), jnp.bfloat16),
        jax.ShapeDtypeStruct((1, M), jnp.float32),
    )

    return pl.pallas_call(
        roi_heads_kernel,
        out_shape=out_shape,
        grid_spec=grid_spec,
        compiler_params=pltpu.CompilerParams(
            dimension_semantics=("parallel",)),
        cost_estimate=_cost_estimate(),
    )(feats_f32, params["w6"], params["b6"], params["w7"], params["b7"],
      params["wc"], params["bc"])


# ---- plain-JAX glue ----------------------------------------------------------
def synthetic_roi_pool(images, chan_proj):
    """Deterministic stand-in for backbone + RPN + RoIAlign.

    images: (B, 3, IMG_H, IMG_W) NCHW -> returns (B, P, C_ROI, POOL, POOL).
    """
    pooled = jax.image.resize(images, (B, IMG_C, POOL, POOL), method="linear")
    feats = jnp.einsum("bchw,kc->bkhw", pooled, chan_proj)        # (B, C_ROI, 7, 7)
    scales = (1.0 + 0.01 * jnp.arange(P, dtype=jnp.float32)).reshape(1, P, 1, 1, 1)
    return feats[:, None, :, :, :] * scales                       # (B, P, C_ROI, 7, 7)


def select_and_pad(h7, pscore):
    """Simplified detection selection: top-36 proposals per image by max
    foreground score, zeroed (== padded) where score <= SCORE_THRESH."""
    s = pscore.reshape(B, P)                                      # (B, P)
    h = h7.astype(jnp.float32).reshape(B, P, HID)                 # (B, P, HID)
    top_s, top_idx = jax.lax.top_k(s, DETECTIONS_PER_IMG)         # (B, 36)
    gathered = jnp.take_along_axis(h, top_idx[..., None], axis=1)  # (B, 36, HID)
    keep = (top_s > SCORE_THRESH)[..., None]
    return jnp.where(keep, gathered, 0.0)                         # (B, 36, HID) f32


def encoder_bu_attention_forward(images, params):
    roi = synthetic_roi_pool(images, params["chan_proj"])         # (B,P,C,7,7)
    feats = roi.reshape(M, D_RAW)                                 # fold batch/proposals, f32
    # zero-pad fc6 K dim to the MXU/lane-aligned 896 (bf16 cast happens in-kernel)
    feats = jnp.pad(feats, ((0, 0), (0, D_PAD - D_RAW)))
    h7, pscore = roi_heads_pallas(feats, params)
    return select_and_pad(h7, pscore)                             # (B, 36, HID)


# ---- deterministic parameter init -------------------------------------------
def init_params(key):
    ks = jax.random.split(key, 6)
    w6 = jax.random.normal(ks[0], (D_RAW, HID), jnp.float32) * 0.02
    w6 = jnp.pad(w6, ((0, D_PAD - D_RAW), (0, 0)))                # zero rows for padded K
    wc = jax.random.normal(ks[2], (HID, NC), jnp.float32) * 0.05
    wc = jnp.pad(wc, ((0, 0), (0, NC_PAD - NC)))                  # zero padded class cols
    bc = jnp.concatenate([jnp.zeros((NC,), jnp.float32),
                          jnp.full((NC_PAD - NC,), NEG_INF, jnp.float32)])
    return {
        "chan_proj": jax.random.normal(ks[5], (C_ROI, IMG_C), jnp.float32) * 0.5,
        # weights in bf16 (f32 accumulation in-kernel); biases kept f32
        "w6": w6.astype(jnp.bfloat16),
        "b6": jnp.full((1, HID), 0.01, jnp.float32),
        "w7": (jax.random.normal(ks[1], (HID, HID), jnp.float32) * 0.02
               ).astype(jnp.bfloat16),
        "b7": jnp.full((1, HID), 0.01, jnp.float32),
        "wc": wc.astype(jnp.bfloat16),
        "bc": bc.reshape(1, NC_PAD),
    }


if __name__ == "__main__":
    key = jax.random.PRNGKey(0)
    k_img, k_par = jax.random.split(key)
    images = jax.random.uniform(k_img, (B, IMG_C, IMG_H, IMG_W), jnp.float32)
    params = init_params(k_par)

    out = encoder_bu_attention_forward(images, params)
    out = jax.block_until_ready(out)
    assert out.shape == (B, DETECTIONS_PER_IMG, HID), out.shape
    assert jnp.all(jnp.isfinite(out))
    print("KERNEL_OK")
</pallas_src>

<mosaic_0001>
module attributes {stable_mosaic.version = 11 : i64} {
  func.func @roi_heads_kernel(%arg0: i32, %arg1: memref<128x896xf32, #tpu.memory_space<vmem>>, %arg2: memref<896x128xbf16, #tpu.memory_space<vmem>>, %arg3: memref<1x128xf32, #tpu.memory_space<vmem>>, %arg4: memref<128x128xbf16, #tpu.memory_space<vmem>>, %arg5: memref<1x128xf32, #tpu.memory_space<vmem>>, %arg6: memref<128x128xbf16, #tpu.memory_space<vmem>>, %arg7: memref<1x128xf32, #tpu.memory_space<vmem>>, %arg8: memref<128x128xbf16, #tpu.memory_space<vmem>>, %arg9: memref<1x128xf32, #tpu.memory_space<vmem>>) attributes {dimension_semantics = [#tpu.dimension_semantics<parallel>], iteration_bounds = array<i64: 1>, scalar_prefetch = 0 : i64, scratch_operands = 0 : i64, tpu.core_type = #tpu.core_type<tc>, window_params = [{transform_indices = @transform_0, window_bounds = array<i64: 128, 896>}, {pipeline_mode = #tpu.pipeline_mode<synchronous>, transform_indices = @transform_1, window_bounds = array<i64: 896, 128>}, {pipeline_mode = #tpu.pipeline_mode<synchronous>, transform_indices = @transform_2, window_bounds = array<i64: 1, 128>}, {pipeline_mode = #tpu.pipeline_mode<synchronous>, transform_indices = @transform_3, window_bounds = array<i64: 128, 128>}, {pipeline_mode = #tpu.pipeline_mode<synchronous>, transform_indices = @transform_4, window_bounds = array<i64: 1, 128>}, {pipeline_mode = #tpu.pipeline_mode<synchronous>, transform_indices = @transform_5, window_bounds = array<i64: 128, 128>}, {pipeline_mode = #tpu.pipeline_mode<synchronous>, transform_indices = @transform_6, window_bounds = array<i64: 1, 128>}, {transform_indices = @transform_7, window_bounds = array<i64: 128, 128>}, {transform_indices = @transform_8, window_bounds = array<i64: 1, 128>}]} {
    %c0 = arith.constant 0 : index
    %c0_0 = arith.constant 0 : index
    %0 = vector.load %arg1[%c0, %c0_0] : memref<128x896xf32, #tpu.memory_space<vmem>>, vector<128x896xf32>
    %1 = arith.truncf %0 : vector<128x896xf32> to vector<128x896xbf16>
    %c0_1 = arith.constant 0 : index
    %c0_2 = arith.constant 0 : index
    %2 = vector.load %arg2[%c0_1, %c0_2] : memref<896x128xbf16, #tpu.memory_space<vmem>>, vector<896x128xbf16>
    %cst = arith.constant dense<0.000000e+00> : vector<128x128xf32>
    %3 = tpu.matmul %1, %2, %cst {dimension_numbers = #tpu.dot_dimension_numbers<[1], [0], [0], [1], [0, 0, 1, 1], [], []>} : vector<128x896xbf16>, vector<896x128xbf16>, vector<128x128xf32> -> vector<128x128xf32>
    %c0_3 = arith.constant 0 : index
    %c0_4 = arith.constant 0 : index
    %4 = vector.load %arg3[%c0_3, %c0_4] : memref<1x128xf32, #tpu.memory_space<vmem>>, vector<1x128xf32>
    %5 = vector.broadcast %4 : vector<1x128xf32> to vector<128x128xf32>
    %6 = arith.addf %3, %5 : vector<128x128xf32>
    %cst_5 = arith.constant 0.000000e+00 : f32
    %7 = vector.broadcast %cst_5 : f32 to vector<128x128xf32>
    %8 = arith.maximumf %6, %7 : vector<128x128xf32>
    %9 = arith.truncf %8 : vector<128x128xf32> to vector<128x128xbf16>
    %c0_6 = arith.constant 0 : index
    %c0_7 = arith.constant 0 : index
    %10 = vector.load %arg4[%c0_6, %c0_7] : memref<128x128xbf16, #tpu.memory_space<vmem>>, vector<128x128xbf16>
    %cst_8 = arith.constant dense<0.000000e+00> : vector<128x128xf32>
    %11 = tpu.matmul %9, %10, %cst_8 {dimension_numbers = #tpu.dot_dimension_numbers<[1], [0], [0], [1], [0, 0, 1, 1], [], []>} : vector<128x128xbf16>, vector<128x128xbf16>, vector<128x128xf32> -> vector<128x128xf32>
    %c0_9 = arith.constant 0 : index
    %c0_10 = arith.constant 0 : index
    %12 = vector.load %arg5[%c0_9, %c0_10] : memref<1x128xf32, #tpu.memory_space<vmem>>, vector<1x128xf32>
    %13 = vector.broadcast %12 : vector<1x128xf32> to vector<128x128xf32>
    %14 = arith.addf %11, %13 : vector<128x128xf32>
    %cst_11 = arith.constant 0.000000e+00 : f32
    %15 = vector.broadcast %cst_11 : f32 to vector<128x128xf32>
    %16 = arith.maximumf %14, %15 : vector<128x128xf32>
    %17 = arith.truncf %16 : vector<128x128xf32> to vector<128x128xbf16>
    %c0_12 = arith.constant 0 : index
    %c0_13 = arith.constant 0 : index
    %18 = vector.load %arg8[%c0_12, %c0_13] : memref<128x128xbf16, #tpu.memory_space<vmem>>, vector<128x128xbf16>
    tpu.vector_store %arg8[%c0_12, %c0_13], %17 {strides = array<i32>} : memref<128x128xbf16, #tpu.memory_space<vmem>>, vector<128x128xbf16>,
    %c0_14 = arith.constant 0 : index
    %c0_15 = arith.constant 0 : index
    %19 = vector.load %arg6[%c0_14, %c0_15] : memref<128x128xbf16, #tpu.memory_space<vmem>>, vector<128x128xbf16>
    %cst_16 = arith.constant dense<0.000000e+00> : vector<128x128xf32>
    %20 = tpu.matmul %17, %19, %cst_16 {dimension_numbers = #tpu.dot_dimension_numbers<[1], [0], [0], [1], [0, 0, 1, 1], [], []>} : vector<128x128xbf16>, vector<128x128xbf16>, vector<128x128xf32> -> vector<128x128xf32>
    %c0_17 = arith.constant 0 : index
    %c0_18 = arith.constant 0 : index
    %21 = vector.load %arg7[%c0_17, %c0_18] : memref<1x128xf32, #tpu.memory_space<vmem>>, vector<1x128xf32>
    %22 = vector.broadcast %21 : vector<1x128xf32> to vector<128x128xf32>
    %23 = arith.addf %20, %22 : vector<128x128xf32>
    %cst_19 = arith.constant dense<0xFF800000> : vector<128xf32>
    %24 = vector.multi_reduction <maximumf>, %23, %cst_19 [1] : vector<128x128xf32> to vector<128xf32>
    %25 = vector.shape_cast %24 : vector<128xf32> to vector<128x1xf32>
    %26 = vector.broadcast %25 : vector<128x1xf32> to vector<128x128xf32>
    %27 = arith.subf %23, %26 : vector<128x128xf32>
    %28 = math.exp %27 : vector<128x128xf32>
    %cst_20 = arith.constant dense<0.000000e+00> : vector<128xf32>
    %29 = vector.multi_reduction <add>, %28, %cst_20 [1] : vector<128x128xf32> to vector<128xf32>
    %30 = vector.shape_cast %29 : vector<128xf32> to vector<128x1xf32>
    %31 = tpu.iota {dimensions = array<i32: 1>} : vector<128x128xi32>
    %c0_i32 = arith.constant 0 : i32
    %32 = vector.broadcast %c0_i32 : i32 to vector<128x128xi32>
    %33 = arith.cmpi eq, %31, %32 : vector<128x128xi32>
    %cst_21 = arith.constant -1.000000e+30 : f32
    %34 = vector.broadcast %cst_21 : f32 to vector<128x128xf32>
    %35 = arith.select %33, %34, %23 : vector<128x128xi1>, vector<128x128xf32>
    %cst_22 = arith.constant dense<0xFF800000> : vector<128xf32>
    %36 = vector.multi_reduction <maximumf>, %35, %cst_22 [1] : vector<128x128xf32> to vector<128xf32>
    %37 = vector.shape_cast %36 : vector<128xf32> to vector<128x1xf32>
    %38 = arith.subf %37, %25 : vector<128x1xf32>
    %39 = math.exp %38 : vector<128x1xf32>
    %40 = tpu.reciprocal %30 {approx = true} : vector<128x1xf32> -> vector<128x1xf32>
    %41 = arith.mulf %39, %40 : vector<128x1xf32>
    %42 = tpu.transpose %41, [1, 0] : vector<128x1xf32> -> vector<1x128xf32>
    %c0_23 = arith.constant 0 : index
    %c0_24 = arith.constant 0 : index
    %43 = vector.load %arg9[%c0_23, %c0_24] : memref<1x128xf32, #tpu.memory_space<vmem>>, vector<1x128xf32>
    tpu.vector_store %arg9[%c0_23, %c0_24], %42 {strides = array<i32>} : memref<1x128xf32, #tpu.memory_space<vmem>>, vector<1x128xf32>,
    return
  }
  func.func @transform_0(%arg0: i32) -> (i32, i32) {
    %c0_i32 = arith.constant 0 : i32
    %c0_i32_0 = arith.constant 0 : i32
    return %arg0, %c0_i32 : i32, i32
  }
  func.func @transform_1(%arg0: i32) -> (i32, i32) {
    %c0_i32 = arith.constant 0 : i32
    %c0_i32_0 = arith.constant 0 : i32
    %c0_i32_1 = arith.constant 0 : i32
    return %c0_i32, %c0_i32_0 : i32, i32
  }
  func.func @transform_2(%arg0: i32) -> (i32, i32) {
    %c0_i32 = arith.constant 0 : i32
    %c0_i32_0 = arith.constant 0 : i32
    %c0_i32_1 = arith.constant 0 : i32
    return %c0_i32, %c0_i32_0 : i32, i32
  }
  func.func @transform_3(%arg0: i32) -> (i32, i32) {
    %c0_i32 = arith.constant 0 : i32
    %c0_i32_0 = arith.constant 0 : i32
    %c0_i32_1 = arith.constant 0 : i32
    return %c0_i32, %c0_i32_0 : i32, i32
  }
  func.func @transform_4(%arg0: i32) -> (i32, i32) {
    %c0_i32 = arith.constant 0 : i32
    %c0_i32_0 = arith.constant 0 : i32
    %c0_i32_1 = arith.constant 0 : i32
    return %c0_i32, %c0_i32_0 : i32, i32
  }
  func.func @transform_5(%arg0: i32) -> (i32, i32) {
    %c0_i32 = arith.constant 0 : i32
    %c0_i32_0 = arith.constant 0 : i32
    %c0_i32_1 = arith.constant 0 : i32
    return %c0_i32, %c0_i32_0 : i32, i32
  }
  func.func @transform_6(%arg0: i32) -> (i32, i32) {
    %c0_i32 = arith.constant 0 : i32
    %c0_i32_0 = arith.constant 0 : i32
    %c0_i32_1 = arith.constant 0 : i32
    return %c0_i32, %c0_i32_0 : i32, i32
  }
  func.func @transform_7(%arg0: i32) -> (i32, i32) {
    %c0_i32 = arith.constant 0 : i32
    %c0_i32_0 = arith.constant 0 : i32
    return %arg0, %c0_i32 : i32, i32
  }
  func.func @transform_8(%arg0: i32) -> (i32, i32) {
    %c0_i32 = arith.constant 0 : i32
    %c0_i32_0 = arith.constant 0 : i32
    return %c0_i32, %arg0 : i32, i32
  }
}

</mosaic_0001>

<llo_original>
// kernel: tpu_custom_call.1
$region0: #{tpu_custom_call.1}
  #allocation0 [shape = 'u32[]', space=smem, size = 0x4, offset = 0x4, fixed_abs, tag = 'smem constant byte address 0x4 - core index']
  #allocation1 [shape = 'u32[72,128]{1,0:T(1,128)}', space=vmem, size = 0x9000, scoped, tag = 'internal scratch']
  %s0 = inlined_call_operand.hbm [shape: f32[128,896], index: 0, kind: input, shape index: {}]
  %s1 = inlined_call_operand.hbm [shape: bf16[896,128], index: 1, kind: input, shape index: {}]
  %s2 = inlined_call_operand.vmem [shape: f32[1,128], index: 2, kind: input, shape index: {}]
  %s3 = inlined_call_operand.hbm [shape: bf16[128,128], index: 3, kind: input, shape index: {}]
  %s4 = inlined_call_operand.vmem [shape: f32[1,128], index: 4, kind: input, shape index: {}]
  %s5 = inlined_call_operand.hbm [shape: bf16[128,128], index: 5, kind: input, shape index: {}]
  %s6 = inlined_call_operand.vmem [shape: f32[1,128], index: 6, kind: input, shape index: {}]
  %s7 = inlined_call_operand.hbm [shape: bf16[128,128], index: 7, kind: output, shape index: {0}]
  %s8 = inlined_call_operand.hbm [shape: f32[1,128], index: 8, kind: output, shape index: {1}]
  %9 = xla_tuple %s7, %s8
  %s10 = sld [smem:[#allocation0]]
  $region62: #{tpu_custom_call.1} parent=0
    _
  %s12 = ssub.s32 1, %s10
  %s13 = scalar_select 0, %s12, %s10
  $region1: #{tpu_custom_call.1} parent=0
    #allocation2 [shape = 'u8[458752]{0}', space=vmem, size = 0x70000, scoped, tag = 'input window, operand 0, single buffered']
    #allocation3 [shape = 's32[1]{0}', space=sflag, size = 0x4, scoped, tag = 'scoped memory for tpu_custom_call.1']
    #allocation4 [shape = 's32[1]{0}', space=sflag, size = 0x4, scoped, tag = 'scoped memory for tpu_custom_call.1']
    #allocation5 [shape = 'u8[229376]{0}', space=vmem, size = 0x38000, scoped, tag = 'input window, operand 1, single buffered']
    #allocation6 [shape = 's32[1]{0}', space=sflag, size = 0x4, scoped, tag = 'scoped memory for tpu_custom_call.1']
    #allocation7 [shape = 'u8[32768]{0}', space=vmem, size = 0x8000, scoped, tag = 'input window, operand 3, single buffered']
    #allocation8 [shape = 'u8[32768]{0}', space=vmem, size = 0x8000, scoped, tag = 'input window, operand 5, single buffered']
    #allocation9 [shape = 's32[1]{0}', space=sflag, size = 0x4, scoped, tag = 'scoped memory for tpu_custom_call.1']
    #allocation10 [shape = 'u8[32768]{0}', space=vmem, size = 0x8000, scoped, tag = 'output window, operand 0, single buffered']
    #allocation11 [shape = 'u8[512]{0}', space=vmem, size = 0x400, scoped, tag = 'output window, operand 1, single buffered']
    #allocation12 [shape = 's32[1]{0}', space=sflag, size = 0x4, scoped, tag = 'scoped memory for tpu_custom_call.1']
    %14 = vsyncpa [#allocation3], 0
    %15 = vsyncpa [#allocation6], 0
    %16 = vsyncpa [#allocation9], 0
    %17 = vsyncpa [#allocation4], 0
    %18 = vsyncpa [#allocation12], 0
    // Predicated region
    $region2: #{tpu_custom_call.1} parent=1 // pred_check
      _
    $region3: #{tpu_custom_call.1} parent=1 // pred_check_branch
      %20 = sbr.rel (0) target = $region5
    $region4: #{tpu_custom_call.1} parent=1 // pred_region
      %22 = vsyncadd [#allocation3], 0
      %s23 = sshll.u32 %s0, 4
      %s24 = int_to_ptr.hbm [resolvable:$true] %s23
      %s25 = sshll.u32 [#allocation2], 4
      %s26 = int_to_ptr.vmem [resolvable:$true] %s25
      %31 = dma.hbm_to_vmem [thread:$0]  %s24, 14336, %s26, [#allocation3], 896, 896, 56
    $region5: #{tpu_custom_call.1} parent=1 // pred_fallthru
      _
    // Predicated region
    $region6: #{tpu_custom_call.1} parent=1 // pred_check
      _
    $region7: #{tpu_custom_call.1} parent=1 // pred_check_branch
      %33 = sbr.rel (0) target = $region9
    $region8: #{tpu_custom_call.1} parent=1 // pred_region
      %35 = vsyncadd [#allocation6], 0
      %s36 = sshll.u32 %s1, 4
      %s37 = int_to_ptr.hbm [resolvable:$true] %s36
      %s38 = sshll.u32 [#allocation5], 4
      %s39 = int_to_ptr.vmem [resolvable:$true] %s38
      %44 = dma.hbm_to_vmem [thread:$0]  %s37, 7168, %s39, [#allocation6], 64, 64, 4
    $region9: #{tpu_custom_call.1} parent=1 // pred_fallthru
      _
    // Predicated region
    $region10: #{tpu_custom_call.1} parent=1 // pred_check
      _
    $region11: #{tpu_custom_call.1} parent=1 // pred_check_branch
      %46 = sbr.rel (0) target = $region13
    $region12: #{tpu_custom_call.1} parent=1 // pred_region
      _
    $region13: #{tpu_custom_call.1} parent=1 // pred_fallthru
      _
    // Predicated region
    $region14: #{tpu_custom_call.1} parent=1 // pred_check
      _
    $region15: #{tpu_custom_call.1} parent=1 // pred_check_branch
      %48 = sbr.rel (0) target = $region17
    $region16: #{tpu_custom_call.1} parent=1 // pred_region
      %50 = vsyncadd [#allocation6], 0
      %s51 = sshll.u32 %s3, 4
      %s52 = int_to_ptr.hbm [resolvable:$true] %s51
      %s53 = sshll.u32 [#allocation7], 4
      %s54 = int_to_ptr.vmem [resolvable:$true] %s53
      %59 = dma.hbm_to_vmem [thread:$0]  %s52, 1024, %s54, [#allocation6], 64, 64, 4
    $region17: #{tpu_custom_call.1} parent=1 // pred_fallthru
      _
    // Predicated region
    $region18: #{tpu_custom_call.1} parent=1 // pred_check
      _
    $region19: #{tpu_custom_call.1} parent=1 // pred_check_branch
      %61 = sbr.rel (0) target = $region21
    $region20: #{tpu_custom_call.1} parent=1 // pred_region
      _
    $region21: #{tpu_custom_call.1} parent=1 // pred_fallthru
      _
    // Predicated region
    $region22: #{tpu_custom_call.1} parent=1 // pred_check
      _
    $region23: #{tpu_custom_call.1} parent=1 // pred_check_branch
      %63 = sbr.rel (0) target = $region25
    $region24: #{tpu_custom_call.1} parent=1 // pred_region
      %65 = vsyncadd [#allocation9], 0
      %s66 = sshll.u32 %s5, 4
      %s67 = int_to_ptr.hbm [resolvable:$true] %s66
      %s68 = sshll.u32 [#allocation8], 4
      %s69 = int_to_ptr.vmem [resolvable:$true] %s68
      %74 = dma.hbm_to_vmem [thread:$0]  %s67, 1024, %s69, [#allocation9], 64, 64, 4
    $region25: #{tpu_custom_call.1} parent=1 // pred_fallthru
      _
    // Predicated region
    $region26: #{tpu_custom_call.1} parent=1 // pred_check
      _
    $region27: #{tpu_custom_call.1} parent=1 // pred_check_branch
      %76 = sbr.rel (0) target = $region29
    $region28: #{tpu_custom_call.1} parent=1 // pred_region
      _
    $region29: #{tpu_custom_call.1} parent=1 // pred_fallthru
      _
    // Predicated region
    $region30: #{tpu_custom_call.1} parent=1 // pred_check
      _
    $region31: #{tpu_custom_call.1} parent=1 // pred_check_branch
      %78 = sbr.rel (0) target = $region33
    $region32: #{tpu_custom_call.1} parent=1 // pred_region
      %80 = dma.done [#allocation3], 14336
    $region33: #{tpu_custom_call.1} parent=1 // pred_fallthru
      _
    // Predicated region
    $region34: #{tpu_custom_call.1} parent=1 // pred_check
      _
    $region35: #{tpu_custom_call.1} parent=1 // pred_check_branch
      %82 = sbr.rel (0) target = $region37
    $region36: #{tpu_custom_call.1} parent=1 // pred_region
      %84 = dma.done [#allocation6], 7168
    $region37: #{tpu_custom_call.1} parent=1 // pred_fallthru
      _
    // Predicated region
    $region38: #{tpu_custom_call.1} parent=1 // pred_check
      _
    $region39: #{tpu_custom_call.1} parent=1 // pred_check_branch
      %86 = sbr.rel (0) target = $region41
    $region40: #{tpu_custom_call.1} parent=1 // pred_region
      %88 = dma.done [#allocation6], 1024
    $region41: #{tpu_custom_call.1} parent=1 // pred_fallthru
      _
    // Predicated region
    $region42: #{tpu_custom_call.1} parent=1 // pred_check
      _
    $region43: #{tpu_custom_call.1} parent=1 // pred_check_branch
      %90 = sbr.rel (0) target = $region45
    $region44: #{tpu_custom_call.1} parent=1 // pred_region
      %92 = dma.done [#allocation9], 1024
    $region45: #{tpu_custom_call.1} parent=1 // pred_fallthru
      _
    %v93 = vld [vmem:[#allocation2] sm:$0xff]
    %v94 = vld [vmem:[#allocation2 + $0x8] sm:$0xff]
    %v95 = vld [vmem:[#allocation2 + $0x10] sm:$0xff]
    %v96 = vld [vmem:[#allocation2 + $0x18] sm:$0xff]
    %v97 = vld [vmem:[#allocation2 + $0x20] sm:$0xff]
    %v98 = vld [vmem:[#allocation2 + $0x28] sm:$0xff]
    %v99 = vld [vmem:[#allocation2 + $0x30] sm:$0xff]
    %v100 = vld [vmem:[#allocation2 + $0x38] sm:$0xff]
    %v101 = vld [vmem:[#allocation2 + $0x40] sm:$0xff]
    %v102 = vld [vmem:[#allocation2 + $0x48] sm:$0xff]
    %v103 = vld [vmem:[#allocation2 + $0x50] sm:$0xff]
    %v104 = vld [vmem:[#allocation2 + $0x58] sm:$0xff]
    %v105 = vld [vmem:[#allocation2 + $0x60] sm:$0xff]
    %v106 = vld [vmem:[#allocation2 + $0x68] sm:$0xff]
    %v107 = vld [vmem:[#allocation2 + $0x70] sm:$0xff]
    %v108 = vld [vmem:[#allocation2 + $0x78] sm:$0xff]
    %v109 = vld [vmem:[#allocation2 + $0x80] sm:$0xff]
    %v110 = vld [vmem:[#allocation2 + $0x88] sm:$0xff]
    %v111 = vld [vmem:[#allocation2 + $0x90] sm:$0xff]
    %v112 = vld [vmem:[#allocation2 + $0x98] sm:$0xff]
    %v113 = vld [vmem:[#allocation2 + $0xa0] sm:$0xff]
    %v114 = vld [vmem:[#allocation2 + $0xa8] sm:$0xff]
    %v115 = vld [vmem:[#allocation2 + $0xb0] sm:$0xff]
    %v116 = vld [vmem:[#allocation2 + $0xb8] sm:$0xff]
    %v117 = vld [vmem:[#allocation2 + $0xc0] sm:$0xff]
    %v118 = vld [vmem:[#allocation2 + $0xc8] sm:$0xff]
    %v119 = vld [vmem:[#allocation2 + $0xd0] sm:$0xff]
    %v120 = vld [vmem:[#allocation2 + $0xd8] sm:$0xff]
    %v121 = vld [vmem:[#allocation2 + $0xe0] sm:$0xff]
    %v122 = vld [vmem:[#allocation2 + $0xe8] sm:$0xff]
    %v123 = vld [vmem:[#allocation2 + $0xf0] sm:$0xff]
    %v124 = vld [vmem:[#allocation2 + $0xf8] sm:$0xff]
    %v125 = vld [vmem:[#allocation2 + $0x100] sm:$0xff]
    %v126 = vld [vmem:[#allocation2 + $0x108] sm:$0xff]
    %v127 = vld [vmem:[#allocation2 + $0x110] sm:$0xff]
    %v128 = vld [vmem:[#allocation2 + $0x118] sm:$0xff]
    %v129 = vld [vmem:[#allocation2 + $0x120] sm:$0xff]
    %v130 = vld [vmem:[#allocation2 + $0x128] sm:$0xff]
    %v131 = vld [vmem:[#allocation2 + $0x130] sm:$0xff]
    %v132 = vld [vmem:[#allocation2 + $0x138] sm:$0xff]
    %v133 = vld [vmem:[#allocation2 + $0x140] sm:$0xff]
    %v134 = vld [vmem:[#allocation2 + $0x148] sm:$0xff]
    %v135 = vld [vmem:[#allocation2 + $0x150] sm:$0xff]
    %v136 = vld [vmem:[#allocation2 + $0x158] sm:$0xff]
    %v137 = vld [vmem:[#allocation2 + $0x160] sm:$0xff]
    %v138 = vld [vmem:[#allocation2 + $0x168] sm:$0xff]
    %v139 = vld [vmem:[#allocation2 + $0x170] sm:$0xff]
    %v140 = vld [vmem:[#allocation2 + $0x178] sm:$0xff]
    %v141 = vld [vmem:[#allocation2 + $0x180] sm:$0xff]
    %v142 = vld [vmem:[#allocation2 + $0x188] sm:$0xff]
    %v143 = vld [vmem:[#allocation2 + $0x190] sm:$0xff]
    %v144 = vld [vmem:[#allocation2 + $0x198] sm:$0xff]
    %v145 = vld [vmem:[#allocation2 + $0x1a0] sm:$0xff]
    %v146 = vld [vmem:[#allocation2 + $0x1a8] sm:$0xff]
    %v147 = vld [vmem:[#allocation2 + $0x1b0] sm:$0xff]
    %v148 = vld [vmem:[#allocation2 + $0x1b8] sm:$0xff]
    %v149 = vld [vmem:[#allocation2 + $0x1c0] sm:$0xff]
    %v150 = vld [vmem:[#allocation2 + $0x1c8] sm:$0xff]
    %v151 = vld [vmem:[#allocation2 + $0x1d0] sm:$0xff]
    %v152 = vld [vmem:[#allocation2 + $0x1d8] sm:$0xff]
    %v153 = vld [vmem:[#allocation2 + $0x1e0] sm:$0xff]
    %v154 = vld [vmem:[#allocation2 + $0x1e8] sm:$0xff]
    %v155 = vld [vmem:[#allocation2 + $0x1f0] sm:$0xff]
    %v156 = vld [vmem:[#allocation2 + $0x1f8] sm:$0xff]
    %v157 = vld [vmem:[#allocation2 + $0x200] sm:$0xff]
    %v158 = vld [vmem:[#allocation2 + $0x208] sm:$0xff]
    %v159 = vld [vmem:[#allocation2 + $0x210] sm:$0xff]
    %v160 = vld [vmem:[#allocation2 + $0x218] sm:$0xff]
    %v161 = vld [vmem:[#allocation2 + $0x220] sm:$0xff]
    %v162 = vld [vmem:[#allocation2 + $0x228] sm:$0xff]
    %v163 = vld [vmem:[#allocation2 + $0x230] sm:$0xff]
    %v164 = vld [vmem:[#allocation2 + $0x238] sm:$0xff]
    %v165 = vld [vmem:[#allocation2 + $0x240] sm:$0xff]
    %v166 = vld [vmem:[#allocation2 + $0x248] sm:$0xff]
    %v167 = vld [vmem:[#allocation2 + $0x250] sm:$0xff]
    %v168 = vld [vmem:[#allocation2 + $0x258] sm:$0xff]
    %v169 = vld [vmem:[#allocation2 + $0x260] sm:$0xff]
    %v170 = vld [vmem:[#allocation2 + $0x268] sm:$0xff]
    %v171 = vld [vmem:[#allocation2 + $0x270] sm:$0xff]
    %v172 = vld [vmem:[#allocation2 + $0x278] sm:$0xff]
    %v173 = vld [vmem:[#allocation2 + $0x280] sm:$0xff]
    %v174 = vld [vmem:[#allocation2 + $0x288] sm:$0xff]
    %v175 = vld [vmem:[#allocation2 + $0x290] sm:$0xff]
    %v176 = vld [vmem:[#allocation2 + $0x298] sm:$0xff]
    %v177 = vld [vmem:[#allocation2 + $0x2a0] sm:$0xff]
    %v178 = vld [vmem:[#allocation2 + $0x2a8] sm:$0xff]
    %v179 = vld [vmem:[#allocation2 + $0x2b0] sm:$0xff]
    %v180 = vld [vmem:[#allocation2 + $0x2b8] sm:$0xff]
    %v181 = vld [vmem:[#allocation2 + $0x2c0] sm:$0xff]
    %v182 = vld [vmem:[#allocation2 + $0x2c8] sm:$0xff]
    %v183 = vld [vmem:[#allocation2 + $0x2d0] sm:$0xff]
    %v184 = vld [vmem:[#allocation2 + $0x2d8] sm:$0xff]
    %v185 = vld [vmem:[#allocation2 + $0x2e0] sm:$0xff]
    %v186 = vld [vmem:[#allocation2 + $0x2e8] sm:$0xff]
    %v187 = vld [vmem:[#allocation2 + $0x2f0] sm:$0xff]
    %v188 = vld [vmem:[#allocation2 + $0x2f8] sm:$0xff]
    %v189 = vld [vmem:[#allocation2 + $0x300] sm:$0xff]
    %v190 = vld [vmem:[#allocation2 + $0x308] sm:$0xff]
    %v191 = vld [vmem:[#allocation2 + $0x310] sm:$0xff]
    %v192 = vld [vmem:[#allocation2 + $0x318] sm:$0xff]
    %v193 = vld [vmem:[#allocation2 + $0x320] sm:$0xff]
    %v194 = vld [vmem:[#allocation2 + $0x328] sm:$0xff]
    %v195 = vld [vmem:[#allocation2 + $0x330] sm:$0xff]
    %v196 = vld [vmem:[#allocation2 + $0x338] sm:$0xff]
    %v197 = vld [vmem:[#allocation2 + $0x340] sm:$0xff]
    %v198 = vld [vmem:[#allocation2 + $0x348] sm:$0xff]
    %v199 = vld [vmem:[#allocation2 + $0x350] sm:$0xff]
    %v200 = vld [vmem:[#allocation2 + $0x358] sm:$0xff]
    %v201 = vld [vmem:[#allocation2 + $0x360] sm:$0xff]
    %v202 = vld [vmem:[#allocation2 + $0x368] sm:$0xff]
    %v203 = vld [vmem:[#allocation2 + $0x370] sm:$0xff]
    %v204 = vld [vmem:[#allocation2 + $0x378] sm:$0xff]
    %v205 = vpack.c.bf16 %v100, %v93
    %v206 = vpack.c.bf16 %v101, %v94
    %v207 = vpack.c.bf16 %v102, %v95
    %v208 = vpack.c.bf16 %v103, %v96
    %v209 = vpack.c.bf16 %v104, %v97
    %v210 = vpack.c.bf16 %v105, %v98
    %v211 = vpack.c.bf16 %v106, %v99
    %v212 = vpack.c.bf16 %v114, %v107
    %v213 = vpack.c.bf16 %v115, %v108
    %v214 = vpack.c.bf16 %v116, %v109
    %v215 = vpack.c.bf16 %v117, %v110
    %v216 = vpack.c.bf16 %v118, %v111
    %v217 = vpack.c.bf16 %v119, %v112
    %v218 = vpack.c.bf16 %v120, %v113
    %v219 = vpack.c.bf16 %v128, %v121
    %v220 = vpack.c.bf16 %v129, %v122
    %v221 = vpack.c.bf16 %v130, %v123
    %v222 = vpack.c.bf16 %v131, %v124
    %v223 = vpack.c.bf16 %v132, %v125
    %v224 = vpack.c.bf16 %v133, %v126
    %v225 = vpack.c.bf16 %v134, %v127
    %v226 = vpack.c.bf16 %v142, %v135
    %v227 = vpack.c.bf16 %v143, %v136
    %v228 = vpack.c.bf16 %v144, %v137
    %v229 = vpack.c.bf16 %v145, %v138
    %v230 = vpack.c.bf16 %v146, %v139
    %v231 = vpack.c.bf16 %v147, %v140
    %v232 = vpack.c.bf16 %v148, %v141
    %v233 = vpack.c.bf16 %v156, %v149
    %v234 = vpack.c.bf16 %v157, %v150
    %v235 = vpack.c.bf16 %v158, %v151
    %v236 = vpack.c.bf16 %v159, %v152
    %v237 = vpack.c.bf16 %v160, %v153
    %v238 = vpack.c.bf16 %v161, %v154
    %v239 = vpack.c.bf16 %v162, %v155
    %v240 = vpack.c.bf16 %v170, %v163
    %v241 = vpack.c.bf16 %v171, %v164
    %v242 = vpack.c.bf16 %v172, %v165
    %v243 = vpack.c.bf16 %v173, %v166
    %v244 = vpack.c.bf16 %v174, %v167
    %v245 = vpack.c.bf16 %v175, %v168
    %v246 = vpack.c.bf16 %v176, %v169
    %v247 = vpack.c.bf16 %v184, %v177
    %v248 = vpack.c.bf16 %v185, %v178
    %v249 = vpack.c.bf16 %v186, %v179
    %v250 = vpack.c.bf16 %v187, %v180
    %v251 = vpack.c.bf16 %v188, %v181
    %v252 = vpack.c.bf16 %v189, %v182
    %v253 = vpack.c.bf16 %v190, %v183
    %v254 = vpack.c.bf16 %v198, %v191
    %v255 = vpack.c.bf16 %v199, %v192
    %v256 = vpack.c.bf16 %v200, %v193
    %v257 = vpack.c.bf16 %v201, %v194
    %v258 = vpack.c.bf16 %v202, %v195
    %v259 = vpack.c.bf16 %v203, %v196
    %v260 = vpack.c.bf16 %v204, %v197
    %v261 = vld [vmem:[#allocation5] sm:$0xf]
    %v262 = vld [vmem:[#allocation5 + $0x4] sm:$0xf]
    %v263 = vld [vmem:[#allocation5 + $0x8] sm:$0xf]
    %v264 = vld [vmem:[#allocation5 + $0xc] sm:$0xf]
    %v265 = vld [vmem:[#allocation5 + $0x10] sm:$0xf]
    %v266 = vld [vmem:[#allocation5 + $0x14] sm:$0xf]
    %v267 = vld [vmem:[#allocation5 + $0x18] sm:$0xf]
    %v268 = vld [vmem:[#allocation5 + $0x1c] sm:$0xf]
    %v269 = vld [vmem:[#allocation5 + $0x20] sm:$0xf]
    %v270 = vld [vmem:[#allocation5 + $0x24] sm:$0xf]
    %v271 = vld [vmem:[#allocation5 + $0x28] sm:$0xf]
    %v272 = vld [vmem:[#allocation5 + $0x2c] sm:$0xf]
    %v273 = vld [vmem:[#allocation5 + $0x30] sm:$0xf]
    %v274 = vld [vmem:[#allocation5 + $0x34] sm:$0xf]
    %v275 = vld [vmem:[#allocation5 + $0x38] sm:$0xf]
    %v276 = vld [vmem:[#allocation5 + $0x3c] sm:$0xf]
    %v277 = vld [vmem:[#allocation5 + $0x40] sm:$0xf]
    %v278 = vld [vmem:[#allocation5 + $0x44] sm:$0xf]
    %v279 = vld [vmem:[#allocation5 + $0x48] sm:$0xf]
    %v280 = vld [vmem:[#allocation5 + $0x4c] sm:$0xf]
    %v281 = vld [vmem:[#allocation5 + $0x50] sm:$0xf]
    %v282 = vld [vmem:[#allocation5 + $0x54] sm:$0xf]
    %v283 = vld [vmem:[#allocation5 + $0x58] sm:$0xf]
    %v284 = vld [vmem:[#allocation5 + $0x5c] sm:$0xf]
    %v285 = vld [vmem:[#allocation5 + $0x60] sm:$0xf]
    %v286 = vld [vmem:[#allocation5 + $0x64] sm:$0xf]
    %v287 = vld [vmem:[#allocation5 + $0x68] sm:$0xf]
    %v288 = vld [vmem:[#allocation5 + $0x6c] sm:$0xf]
    %v289 = vld [vmem:[#allocation5 + $0x70] sm:$0xf]
    %v290 = vld [vmem:[#allocation5 + $0x74] sm:$0xf]
    %v291 = vld [vmem:[#allocation5 + $0x78] sm:$0xf]
    %v292 = vld [vmem:[#allocation5 + $0x7c] sm:$0xf]
    %v293 = vld [vmem:[#allocation5 + $0x80] sm:$0xf]
    %v294 = vld [vmem:[#allocation5 + $0x84] sm:$0xf]
    %v295 = vld [vmem:[#allocation5 + $0x88] sm:$0xf]
    %v296 = vld [vmem:[#allocation5 + $0x8c] sm:$0xf]
    %v297 = vld [vmem:[#allocation5 + $0x90] sm:$0xf]
    %v298 = vld [vmem:[#allocation5 + $0x94] sm:$0xf]
    %v299 = vld [vmem:[#allocation5 + $0x98] sm:$0xf]
    %v300 = vld [vmem:[#allocation5 + $0x9c] sm:$0xf]
    %v301 = vld [vmem:[#allocation5 + $0xa0] sm:$0xf]
    %v302 = vld [vmem:[#allocation5 + $0xa4] sm:$0xf]
    %v303 = vld [vmem:[#allocation5 + $0xa8] sm:$0xf]
    %v304 = vld [vmem:[#allocation5 + $0xac] sm:$0xf]
    %v305 = vld [vmem:[#allocation5 + $0xb0] sm:$0xf]
    %v306 = vld [vmem:[#allocation5 + $0xb4] sm:$0xf]
    %v307 = vld [vmem:[#allocation5 + $0xb8] sm:$0xf]
    %v308 = vld [vmem:[#allocation5 + $0xbc] sm:$0xf]
    %v309 = vld [vmem:[#allocation5 + $0xc0] sm:$0xf]
    %v310 = vld [vmem:[#allocation5 + $0xc4] sm:$0xf]
    %v311 = vld [vmem:[#allocation5 + $0xc8] sm:$0xf]
    %v312 = vld [vmem:[#allocation5 + $0xcc] sm:$0xf]
    %v313 = vld [vmem:[#allocation5 + $0xd0] sm:$0xf]
    %v314 = vld [vmem:[#allocation5 + $0xd4] sm:$0xf]
    %v315 = vld [vmem:[#allocation5 + $0xd8] sm:$0xf]
    %v316 = vld [vmem:[#allocation5 + $0xdc] sm:$0xf]
    %v317 = vld [vmem:[#allocation5 + $0xe0] sm:$0xf]
    %v318 = vld [vmem:[#allocation5 + $0xe4] sm:$0xf]
    %v319 = vld [vmem:[#allocation5 + $0xe8] sm:$0xf]
    %v320 = vld [vmem:[#allocation5 + $0xec] sm:$0xf]
    %v321 = vld [vmem:[#allocation5 + $0xf0] sm:$0xf]
    %v322 = vld [vmem:[#allocation5 + $0xf4] sm:$0xf]
    %v323 = vld [vmem:[#allocation5 + $0xf8] sm:$0xf]
    %v324 = vld [vmem:[#allocation5 + $0xfc] sm:$0xf]
    %v325 = vld [vmem:[#allocation5 + $0x100] sm:$0xf]
    %v326 = vld [vmem:[#allocation5 + $0x104] sm:$0xf]
    %v327 = vld [vmem:[#allocation5 + $0x108] sm:$0xf]
    %v328 = vld [vmem:[#allocation5 + $0x10c] sm:$0xf]
    %v329 = vld [vmem:[#allocation5 + $0x110] sm:$0xf]
    %v330 = vld [vmem:[#allocation5 + $0x114] sm:$0xf]
    %v331 = vld [vmem:[#allocation5 + $0x118] sm:$0xf]
    %v332 = vld [vmem:[#allocation5 + $0x11c] sm:$0xf]
    %v333 = vld [vmem:[#allocation5 + $0x120] sm:$0xf]
    %v334 = vld [vmem:[#allocation5 + $0x124] sm:$0xf]
    %v335 = vld [vmem:[#allocation5 + $0x128] sm:$0xf]
    %v336 = vld [vmem:[#allocation5 + $0x12c] sm:$0xf]
    %v337 = vld [vmem:[#allocation5 + $0x130] sm:$0xf]
    %v338 = vld [vmem:[#allocation5 + $0x134] sm:$0xf]
    %v339 = vld [vmem:[#allocation5 + $0x138] sm:$0xf]
    %v340 = vld [vmem:[#allocation5 + $0x13c] sm:$0xf]
    %v341 = vld [vmem:[#allocation5 + $0x140] sm:$0xf]
    %v342 = vld [vmem:[#allocation5 + $0x144] sm:$0xf]
    %v343 = vld [vmem:[#allocation5 + $0x148] sm:$0xf]
    %v344 = vld [vmem:[#allocation5 + $0x14c] sm:$0xf]
    %v345 = vld [vmem:[#allocation5 + $0x150] sm:$0xf]
    %v346 = vld [vmem:[#allocation5 + $0x154] sm:$0xf]
    %v347 = vld [vmem:[#allocation5 + $0x158] sm:$0xf]
    %v348 = vld [vmem:[#allocation5 + $0x15c] sm:$0xf]
    %v349 = vld [vmem:[#allocation5 + $0x160] sm:$0xf]
    %v350 = vld [vmem:[#allocation5 + $0x164] sm:$0xf]
    %v351 = vld [vmem:[#allocation5 + $0x168] sm:$0xf]
    %v352 = vld [vmem:[#allocation5 + $0x16c] sm:$0xf]
    %v353 = vld [vmem:[#allocation5 + $0x170] sm:$0xf]
    %v354 = vld [vmem:[#allocation5 + $0x174] sm:$0xf]
    %v355 = vld [vmem:[#allocation5 + $0x178] sm:$0xf]
    %v356 = vld [vmem:[#allocation5 + $0x17c] sm:$0xf]
    %v357 = vld [vmem:[#allocation5 + $0x180] sm:$0xf]
    %v358 = vld [vmem:[#allocation5 + $0x184] sm:$0xf]
    %v359 = vld [vmem:[#allocation5 + $0x188] sm:$0xf]
    %v360 = vld [vmem:[#allocation5 + $0x18c] sm:$0xf]
    %v361 = vld [vmem:[#allocation5 + $0x190] sm:$0xf]
    %v362 = vld [vmem:[#allocation5 + $0x194] sm:$0xf]
    %v363 = vld [vmem:[#allocation5 + $0x198] sm:$0xf]
    %v364 = vld [vmem:[#allocation5 + $0x19c] sm:$0xf]
    %v365 = vld [vmem:[#allocation5 + $0x1a0] sm:$0xf]
    %v366 = vld [vmem:[#allocation5 + $0x1a4] sm:$0xf]
    %v367 = vld [vmem:[#allocation5 + $0x1a8] sm:$0xf]
    %v368 = vld [vmem:[#allocation5 + $0x1ac] sm:$0xf]
    %v369 = vld [vmem:[#allocation5 + $0x1b0] sm:$0xf]
    %v370 = vld [vmem:[#allocation5 + $0x1b4] sm:$0xf]
    %v371 = vld [vmem:[#allocation5 + $0x1b8] sm:$0xf]
    %v372 = vld [vmem:[#allocation5 + $0x1bc] sm:$0xf]
    %v373 = vld [vmem:[%s2] sm:$0x1]
    %v375 = vperm.slane %v373, 0
    %v489 = vunpack.c.l.b16 %v261
    %v490 = vunpack.c.l.b16 %v262
    %v491 = vunpack.c.l.b16 %v263
    %v492 = vunpack.c.l.b16 %v264
    %v493 = vunpack.c.l.b16 %v265
    %v494 = vunpack.c.l.b16 %v266
    %v495 = vunpack.c.l.b16 %v267
    %v496 = vunpack.c.l.b16 %v268
    %v497 = vunpack.c.l.b16 %v269
    %v498 = vunpack.c.l.b16 %v270
    %v499 = vunpack.c.l.b16 %v271
    %v500 = vunpack.c.l.b16 %v272
    %v501 = vunpack.c.l.b16 %v273
    %v502 = vunpack.c.l.b16 %v274
    %v503 = vunpack.c.l.b16 %v275
    %v504 = vunpack.c.l.b16 %v276
    %v505 = vunpack.c.l.b16 %v277
    %v506 = vunpack.c.l.b16 %v278
    %v507 = vunpack.c.l.b16 %v279
    %v508 = vunpack.c.l.b16 %v280
    %v509 = vunpack.c.l.b16 %v281
    %v510 = vunpack.c.l.b16 %v282
    %v511 = vunpack.c.l.b16 %v283
    %v512 = vunpack.c.l.b16 %v284
    %v513 = vunpack.c.l.b16 %v285
    %v514 = vunpack.c.l.b16 %v286
    %v515 = vunpack.c.l.b16 %v287
    %v516 = vunpack.c.l.b16 %v288
    %v517 = vunpack.c.l.b16 %v289
    %v518 = vunpack.c.l.b16 %v290
    %v519 = vunpack.c.l.b16 %v291
    %v520 = vunpack.c.l.b16 %v292
    %v521 = vunpack.c.l.b16 %v293
    %v522 = vunpack.c.l.b16 %v294
    %v523 = vunpack.c.l.b16 %v295
    %v524 = vunpack.c.l.b16 %v296
    %v525 = vunpack.c.l.b16 %v297
    %v526 = vunpack.c.l.b16 %v298
    %v527 = vunpack.c.l.b16 %v299
    %v528 = vunpack.c.l.b16 %v300
    %v529 = vunpack.c.l.b16 %v301
    %v530 = vunpack.c.l.b16 %v302
    %v531 = vunpack.c.l.b16 %v303
    %v532 = vunpack.c.l.b16 %v304
    %v533 = vunpack.c.l.b16 %v305
    %v534 = vunpack.c.l.b16 %v306
    %v535 = vunpack.c.l.b16 %v307
    %v536 = vunpack.c.l.b16 %v308
    %v537 = vunpack.c.l.b16 %v309
    %v538 = vunpack.c.l.b16 %v310
    %v539 = vunpack.c.l.b16 %v311
    %v540 = vunpack.c.l.b16 %v312
    %v541 = vunpack.c.l.b16 %v313
    %v542 = vunpack.c.l.b16 %v314
    %v543 = vunpack.c.l.b16 %v315
    %v544 = vunpack.c.l.b16 %v316
    %v545 = vunpack.c.l.b16 %v317
    %v546 = vunpack.c.l.b16 %v318
    %v547 = vunpack.c.l.b16 %v319
    %v548 = vunpack.c.l.b16 %v320
    %v549 = vunpack.c.l.b16 %v321
    %v550 = vunpack.c.l.b16 %v322
    %v551 = vunpack.c.l.b16 %v323
    %v552 = vunpack.c.l.b16 %v324
    %v553 = vunpack.c.l.b16 %v325
    %v554 = vunpack.c.l.b16 %v326
    %v555 = vunpack.c.l.b16 %v327
    %v556 = vunpack.c.l.b16 %v328
    %v557 = vunpack.c.l.b16 %v329
    %v558 = vunpack.c.l.b16 %v330
    %v559 = vunpack.c.l.b16 %v331
    %v560 = vunpack.c.l.b16 %v332
    %v561 = vunpack.c.l.b16 %v333
    %v562 = vunpack.c.l.b16 %v334
    %v563 = vunpack.c.l.b16 %v335
    %v564 = vunpack.c.l.b16 %v336
    %v565 = vunpack.c.l.b16 %v337
    %v566 = vunpack.c.l.b16 %v338
    %v567 = vunpack.c.l.b16 %v339
    %v568 = vunpack.c.l.b16 %v340
    %v569 = vunpack.c.l.b16 %v341
    %v570 = vunpack.c.l.b16 %v342
    %v571 = vunpack.c.l.b16 %v343
    %v572 = vunpack.c.l.b16 %v344
    %v573 = vunpack.c.l.b16 %v345
    %v574 = vunpack.c.l.b16 %v346
    %v575 = vunpack.c.l.b16 %v347
    %v576 = vunpack.c.l.b16 %v348
    %v577 = vunpack.c.l.b16 %v349
    %v578 = vunpack.c.l.b16 %v350
    %v579 = vunpack.c.l.b16 %v351
    %v580 = vunpack.c.l.b16 %v352
    %v581 = vunpack.c.l.b16 %v353
    %v582 = vunpack.c.l.b16 %v354
    %v583 = vunpack.c.l.b16 %v355
    %v584 = vunpack.c.l.b16 %v356
    %v585 = vunpack.c.l.b16 %v357
    %v586 = vunpack.c.l.b16 %v358
    %v587 = vunpack.c.l.b16 %v359
    %v588 = vunpack.c.l.b16 %v360
    %v589 = vunpack.c.l.b16 %v361
    %v590 = vunpack.c.l.b16 %v362
    %v591 = vunpack.c.l.b16 %v363
    %v592 = vunpack.c.l.b16 %v364
    %v593 = vunpack.c.l.b16 %v365
    %v594 = vunpack.c.l.b16 %v366
    %v595 = vunpack.c.l.b16 %v367
    %v596 = vunpack.c.l.b16 %v368
    %v597 = vunpack.c.l.b16 %v369
    %v598 = vunpack.c.l.b16 %v370
    %v599 = vunpack.c.l.b16 %v371
    %v600 = vunpack.c.l.b16 %v372
    %v601 = vpack.c.b16 %v490, %v489
    %v602 = vpack.c.b16 %v492, %v491
    %v603 = vpack.c.b16 %v494, %v493
    %v604 = vpack.c.b16 %v496, %v495
    %v605 = vpack.c.b16 %v498, %v497
    %v606 = vpack.c.b16 %v500, %v499
    %v607 = vpack.c.b16 %v502, %v501
    %v608 = vpack.c.b16 %v504, %v503
    %v609 = vpack.c.b16 %v506, %v505
    %v610 = vpack.c.b16 %v508, %v507
    %v611 = vpack.c.b16 %v510, %v509
    %v612 = vpack.c.b16 %v512, %v511
    %v613 = vpack.c.b16 %v514, %v513
    %v614 = vpack.c.b16 %v516, %v515
    %v615 = vpack.c.b16 %v518, %v517
    %v616 = vpack.c.b16 %v520, %v519
    %v617 = vpack.c.b16 %v522, %v521
    %v618 = vpack.c.b16 %v524, %v523
    %v619 = vpack.c.b16 %v526, %v525
    %v620 = vpack.c.b16 %v528, %v527
    %v621 = vpack.c.b16 %v530, %v529
    %v622 = vpack.c.b16 %v532, %v531
    %v623 = vpack.c.b16 %v534, %v533
    %v624 = vpack.c.b16 %v536, %v535
    %v625 = vpack.c.b16 %v538, %v537
    %v626 = vpack.c.b16 %v540, %v539
    %v627 = vpack.c.b16 %v542, %v541
    %v628 = vpack.c.b16 %v544, %v543
    %v629 = vpack.c.b16 %v546, %v545
    %v630 = vpack.c.b16 %v548, %v547
    %v631 = vpack.c.b16 %v550, %v549
    %v632 = vpack.c.b16 %v552, %v551
    %v633 = vpack.c.b16 %v554, %v553
    %v634 = vpack.c.b16 %v556, %v555
    %v635 = vpack.c.b16 %v558, %v557
    %v636 = vpack.c.b16 %v560, %v559
    %v637 = vpack.c.b16 %v562, %v561
    %v638 = vpack.c.b16 %v564, %v563
    %v639 = vpack.c.b16 %v566, %v565
    %v640 = vpack.c.b16 %v568, %v567
    %v641 = vpack.c.b16 %v570, %v569
    %v642 = vpack.c.b16 %v572, %v571
    %v643 = vpack.c.b16 %v574, %v573
    %v644 = vpack.c.b16 %v576, %v575
    %v645 = vpack.c.b16 %v578, %v577
    %v646 = vpack.c.b16 %v580, %v579
    %v647 = vpack.c.b16 %v582, %v581
    %v648 = vpack.c.b16 %v584, %v583
    %v649 = vpack.c.b16 %v586, %v585
    %v650 = vpack.c.b16 %v588, %v587
    %v651 = vpack.c.b16 %v590, %v589
    %v652 = vpack.c.b16 %v592, %v591
    %v653 = vpack.c.b16 %v594, %v593
    %v654 = vpack.c.b16 %v596, %v595
    %v655 = vpack.c.b16 %v598, %v597
    %v656 = vpack.c.b16 %v600, %v599
    %713 = vmatpush.bf16.msra.mxu0 %v608
    %714 = vmatpush.bf16.msra.mxu0 %v607
    %715 = vmatpush.bf16.msra.mxu0 %v606
    %716 = vmatpush.bf16.msra.mxu0 %v605
    %717 = vmatpush.bf16.msra.mxu0 %v604
    %718 = vmatpush.bf16.msra.mxu0 %v603
    %719 = vmatpush.bf16.msra.mxu0 %v602
    %720 = vmatpush.bf16.msra.mxu0 %v601
    %721 = vmatmul.bf16.gmra.mxu0 %v205
    %v722 = vpop.f32.mrf.mxu0
    %v723 = vadd.f32 %v375, %v722
    %v724 = vpop.f32.mrf.mxu0
    %v725 = vadd.f32 %v375, %v724
    %726 = vmatmul.bf16.gmra.mxu0 %v212
    %v727 = vpop.f32.mrf.mxu0
    %v728 = vadd.f32 %v375, %v727
    %v729 = vpop.f32.mrf.mxu0
    %v730 = vadd.f32 %v375, %v729
    %731 = vmatmul.bf16.gmra.mxu0 %v219
    %v732 = vpop.f32.mrf.mxu0
    %v733 = vadd.f32 %v375, %v732
    %v734 = vpop.f32.mrf.mxu0
    %v735 = vadd.f32 %v375, %v734
    %736 = vmatmul.bf16.gmra.mxu0 %v226
    %v737 = vpop.f32.mrf.mxu0
    %v738 = vadd.f32 %v375, %v737
    %v739 = vpop.f32.mrf.mxu0
    %v740 = vadd.f32 %v375, %v739
    %741 = vmatmul.bf16.gmra.mxu0 %v233
    %v742 = vpop.f32.mrf.mxu0
    %v743 = vadd.f32 %v375, %v742
    %v744 = vpop.f32.mrf.mxu0
    %v745 = vadd.f32 %v375, %v744
    %746 = vmatmul.bf16.gmra.mxu0 %v240
    %v747 = vpop.f32.mrf.mxu0
    %v748 = vadd.f32 %v375, %v747
    %v749 = vpop.f32.mrf.mxu0
    %v750 = vadd.f32 %v375, %v749
    %751 = vmatmul.bf16.gmra.mxu0 %v247
    %v752 = vpop.f32.mrf.mxu0
    %v753 = vadd.f32 %v375, %v752
    %v754 = vpop.f32.mrf.mxu0
    %v755 = vadd.f32 %v375, %v754
    %756 = vmatmul.bf16.gmra.mxu0 %v254
    %v757 = vpop.f32.mrf.mxu0
    %v758 = vadd.f32 %v375, %v757
    %v759 = vpop.f32.mrf.mxu0
    %v760 = vadd.f32 %v375, %v759
    %761 = vdwg.mxu0
    %762 = vmatpush.bf16.msra.mxu0 %v616
    %763 = vmatpush.bf16.msra.mxu0 %v615
    %764 = vmatpush.bf16.msra.mxu0 %v614
    %765 = vmatpush.bf16.msra.mxu0 %v613
    %766 = vmatpush.bf16.msra.mxu0 %v612
    %767 = vmatpush.bf16.msra.mxu0 %v611
    %768 = vmatpush.bf16.msra.mxu0 %v610
    %769 = vmatpush.bf16.msra.mxu0 %v609
    %770 = vmatmul.bf16.gmra.mxu0 %v206
    %v771 = vpop.f32.mrf.mxu0
    %v772 = vadd.f32 %v723, %v771
    %v773 = vpop.f32.mrf.mxu0
    %v774 = vadd.f32 %v725, %v773
    %775 = vmatmul.bf16.gmra.mxu0 %v213
    %v776 = vpop.f32.mrf.mxu0
    %v777 = vadd.f32 %v728, %v776
    %v778 = vpop.f32.mrf.mxu0
    %v779 = vadd.f32 %v730, %v778
    %780 = vmatmul.bf16.gmra.mxu0 %v220
    %v781 = vpop.f32.mrf.mxu0
    %v782 = vadd.f32 %v733, %v781
    %v783 = vpop.f32.mrf.mxu0
    %v784 = vadd.f32 %v735, %v783
    %785 = vmatmul.bf16.gmra.mxu0 %v227
    %v786 = vpop.f32.mrf.mxu0
    %v787 = vadd.f32 %v738, %v786
    %v788 = vpop.f32.mrf.mxu0
    %v789 = vadd.f32 %v740, %v788
    %790 = vmatmul.bf16.gmra.mxu0 %v234
    %v791 = vpop.f32.mrf.mxu0
    %v792 = vadd.f32 %v743, %v791
    %v793 = vpop.f32.mrf.mxu0
    %v794 = vadd.f32 %v745, %v793
    %795 = vmatmul.bf16.gmra.mxu0 %v241
    %v796 = vpop.f32.mrf.mxu0
    %v797 = vadd.f32 %v748, %v796
    %v798 = vpop.f32.mrf.mxu0
    %v799 = vadd.f32 %v750, %v798
    %800 = vmatmul.bf16.gmra.mxu0 %v248
    %v801 = vpop.f32.mrf.mxu0
    %v802 = vadd.f32 %v753, %v801
    %v803 = vpop.f32.mrf.mxu0
    %v804 = vadd.f32 %v755, %v803
    %805 = vmatmul.bf16.gmra.mxu0 %v255
    %v806 = vpop.f32.mrf.mxu0
    %v807 = vadd.f32 %v758, %v806
    %v808 = vpop.f32.mrf.mxu0
    %v809 = vadd.f32 %v760, %v808
    %810 = vdwg.mxu0
    %811 = vmatpush.bf16.msra.mxu0 %v624
    %812 = vmatpush.bf16.msra.mxu0 %v623
    %813 = vmatpush.bf16.msra.mxu0 %v622
    %814 = vmatpush.bf16.msra.mxu0 %v621
    %815 = vmatpush.bf16.msra.mxu0 %v620
    %816 = vmatpush.bf16.msra.mxu0 %v619
    %817 = vmatpush.bf16.msra.mxu0 %v618
    %818 = vmatpush.bf16.msra.mxu0 %v617
    %819 = vmatmul.bf16.gmra.mxu0 %v207
    %v820 = vpop.f32.mrf.mxu0
    %v821 = vadd.f32 %v772, %v820
    %v822 = vpop.f32.mrf.mxu0
    %v823 = vadd.f32 %v774, %v822
    %824 = vmatmul.bf16.gmra.mxu0 %v214
    %v825 = vpop.f32.mrf.mxu0
    %v826 = vadd.f32 %v777, %v825
    %v827 = vpop.f32.mrf.mxu0
    %v828 = vadd.f32 %v779, %v827
    %829 = vmatmul.bf16.gmra.mxu0 %v221
    %v830 = vpop.f32.mrf.mxu0
    %v831 = vadd.f32 %v782, %v830
    %v832 = vpop.f32.mrf.mxu0
    %v833 = vadd.f32 %v784, %v832
    %834 = vmatmul.bf16.gmra.mxu0 %v228
    %v835 = vpop.f32.mrf.mxu0
    %v836 = vadd.f32 %v787, %v835
    %v837 = vpop.f32.mrf.mxu0
    %v838 = vadd.f32 %v789, %v837
    %839 = vmatmul.bf16.gmra.mxu0 %v235
    %v840 = vpop.f32.mrf.mxu0
    %v841 = vadd.f32 %v792, %v840
    %v842 = vpop.f32.mrf.mxu0
    %v843 = vadd.f32 %v794, %v842
    %844 = vmatmul.bf16.gmra.mxu0 %v242
    %v845 = vpop.f32.mrf.mxu0
    %v846 = vadd.f32 %v797, %v845
    %v847 = vpop.f32.mrf.mxu0
    %v848 = vadd.f32 %v799, %v847
    %849 = vmatmul.bf16.gmra.mxu0 %v249
    %v850 = vpop.f32.mrf.mxu0
    %v851 = vadd.f32 %v802, %v850
    %v852 = vpop.f32.mrf.mxu0
    %v853 = vadd.f32 %v804, %v852
    %854 = vmatmul.bf16.gmra.mxu0 %v256
    %v855 = vpop.f32.mrf.mxu0
    %v856 = vadd.f32 %v807, %v855
    %v857 = vpop.f32.mrf.mxu0
    %v858 = vadd.f32 %v809, %v857
    %859 = vdwg.mxu0
    %860 = vmatpush.bf16.msra.mxu0 %v632
    %861 = vmatpush.bf16.msra.mxu0 %v631
    %862 = vmatpush.bf16.msra.mxu0 %v630
    %863 = vmatpush.bf16.msra.mxu0 %v629
    %864 = vmatpush.bf16.msra.mxu0 %v628
    %865 = vmatpush.bf16.msra.mxu0 %v627
    %866 = vmatpush.bf16.msra.mxu0 %v626
    %867 = vmatpush.bf16.msra.mxu0 %v625
    %868 = vmatmul.bf16.gmra.mxu0 %v208
    %v869 = vpop.f32.mrf.mxu0
    %v870 = vadd.f32 %v821, %v869
    %v871 = vpop.f32.mrf.mxu0
    %v872 = vadd.f32 %v823, %v871
    %873 = vmatmul.bf16.gmra.mxu0 %v215
    %v874 = vpop.f32.mrf.mxu0
    %v875 = vadd.f32 %v826, %v874
    %v876 = vpop.f32.mrf.mxu0
    %v877 = vadd.f32 %v828, %v876
    %878 = vmatmul.bf16.gmra.mxu0 %v222
    %v879 = vpop.f32.mrf.mxu0
    %v880 = vadd.f32 %v831, %v879
    %v881 = vpop.f32.mrf.mxu0
    %v882 = vadd.f32 %v833, %v881
    %883 = vmatmul.bf16.gmra.mxu0 %v229
    %v884 = vpop.f32.mrf.mxu0
    %v885 = vadd.f32 %v836, %v884
    %v886 = vpop.f32.mrf.mxu0
    %v887 = vadd.f32 %v838, %v886
    %888 = vmatmul.bf16.gmra.mxu0 %v236
    %v889 = vpop.f32.mrf.mxu0
    %v890 = vadd.f32 %v841, %v889
    %v891 = vpop.f32.mrf.mxu0
    %v892 = vadd.f32 %v843, %v891
    %893 = vmatmul.bf16.gmra.mxu0 %v243
    %v894 = vpop.f32.mrf.mxu0
    %v895 = vadd.f32 %v846, %v894
    %v896 = vpop.f32.mrf.mxu0
    %v897 = vadd.f32 %v848, %v896
    %898 = vmatmul.bf16.gmra.mxu0 %v250
    %v899 = vpop.f32.mrf.mxu0
    %v900 = vadd.f32 %v851, %v899
    %v901 = vpop.f32.mrf.mxu0
    %v902 = vadd.f32 %v853, %v901
    %903 = vmatmul.bf16.gmra.mxu0 %v257
    %v904 = vpop.f32.mrf.mxu0
    %v905 = vadd.f32 %v856, %v904
    %v906 = vpop.f32.mrf.mxu0
    %v907 = vadd.f32 %v858, %v906
    %908 = vdwg.mxu0
    %909 = vmatpush.bf16.msra.mxu0 %v640
    %910 = vmatpush.bf16.msra.mxu0 %v639
    %911 = vmatpush.bf16.msra.mxu0 %v638
    %912 = vmatpush.bf16.msra.mxu0 %v637
    %913 = vmatpush.bf16.msra.mxu0 %v636
    %914 = vmatpush.bf16.msra.mxu0 %v635
    %915 = vmatpush.bf16.msra.mxu0 %v634
    %916 = vmatpush.bf16.msra.mxu0 %v633
    %917 = vmatmul.bf16.gmra.mxu0 %v209
    %v918 = vpop.f32.mrf.mxu0
    %v919 = vadd.f32 %v870, %v918
    %v920 = vpop.f32.mrf.mxu0
    %v921 = vadd.f32 %v872, %v920
    %922 = vmatmul.bf16.gmra.mxu0 %v216
    %v923 = vpop.f32.mrf.mxu0
    %v924 = vadd.f32 %v875, %v923
    %v925 = vpop.f32.mrf.mxu0
    %v926 = vadd.f32 %v877, %v925
    %927 = vmatmul.bf16.gmra.mxu0 %v223
    %v928 = vpop.f32.mrf.mxu0
    %v929 = vadd.f32 %v880, %v928
    %v930 = vpop.f32.mrf.mxu0
    %v931 = vadd.f32 %v882, %v930
    %932 = vmatmul.bf16.gmra.mxu0 %v230
    %v933 = vpop.f32.mrf.mxu0
    %v934 = vadd.f32 %v885, %v933
    %v935 = vpop.f32.mrf.mxu0
    %v936 = vadd.f32 %v887, %v935
    %937 = vmatmul.bf16.gmra.mxu0 %v237
    %v938 = vpop.f32.mrf.mxu0
    %v939 = vadd.f32 %v890, %v938
    %v940 = vpop.f32.mrf.mxu0
    %v941 = vadd.f32 %v892, %v940
    %942 = vmatmul.bf16.gmra.mxu0 %v244
    %v943 = vpop.f32.mrf.mxu0
    %v944 = vadd.f32 %v895, %v943
    %v945 = vpop.f32.mrf.mxu0
    %v946 = vadd.f32 %v897, %v945
    %947 = vmatmul.bf16.gmra.mxu0 %v251
    %v948 = vpop.f32.mrf.mxu0
    %v949 = vadd.f32 %v900, %v948
    %v950 = vpop.f32.mrf.mxu0
    %v951 = vadd.f32 %v902, %v950
    %952 = vmatmul.bf16.gmra.mxu0 %v258
    %v953 = vpop.f32.mrf.mxu0
    %v954 = vadd.f32 %v905, %v953
    %v955 = vpop.f32.mrf.mxu0
    %v956 = vadd.f32 %v907, %v955
    %957 = vdwg.mxu0
    %958 = vmatpush.bf16.msra.mxu0 %v648
    %959 = vmatpush.bf16.msra.mxu0 %v647
    %960 = vmatpush.bf16.msra.mxu0 %v646
    %961 = vmatpush.bf16.msra.mxu0 %v645
    %962 = vmatpush.bf16.msra.mxu0 %v644
    %963 = vmatpush.bf16.msra.mxu0 %v643
    %964 = vmatpush.bf16.msra.mxu0 %v642
    %965 = vmatpush.bf16.msra.mxu0 %v641
    %966 = vmatmul.bf16.gmra.mxu0 %v210
    %v967 = vpop.f32.mrf.mxu0
    %v968 = vadd.f32 %v919, %v967
    %v969 = vpop.f32.mrf.mxu0
    %v970 = vadd.f32 %v921, %v969
    %971 = vmatmul.bf16.gmra.mxu0 %v217
    %v972 = vpop.f32.mrf.mxu0
    %v973 = vadd.f32 %v924, %v972
    %v974 = vpop.f32.mrf.mxu0
    %v975 = vadd.f32 %v926, %v974
    %976 = vmatmul.bf16.gmra.mxu0 %v224
    %v977 = vpop.f32.mrf.mxu0
    %v978 = vadd.f32 %v929, %v977
    %v979 = vpop.f32.mrf.mxu0
    %v980 = vadd.f32 %v931, %v979
    %981 = vmatmul.bf16.gmra.mxu0 %v231
    %v982 = vpop.f32.mrf.mxu0
    %v983 = vadd.f32 %v934, %v982
    %v984 = vpop.f32.mrf.mxu0
    %v985 = vadd.f32 %v936, %v984
    %986 = vmatmul.bf16.gmra.mxu0 %v238
    %v987 = vpop.f32.mrf.mxu0
    %v988 = vadd.f32 %v939, %v987
    %v989 = vpop.f32.mrf.mxu0
    %v990 = vadd.f32 %v941, %v989
    %991 = vmatmul.bf16.gmra.mxu0 %v245
    %v992 = vpop.f32.mrf.mxu0
    %v993 = vadd.f32 %v944, %v992
    %v994 = vpop.f32.mrf.mxu0
    %v995 = vadd.f32 %v946, %v994
    %996 = vmatmul.bf16.gmra.mxu0 %v252
    %v997 = vpop.f32.mrf.mxu0
    %v998 = vadd.f32 %v949, %v997
    %v999 = vpop.f32.mrf.mxu0
    %v1000 = vadd.f32 %v951, %v999
    %1001 = vmatmul.bf16.gmra.mxu0 %v259
    %v1002 = vpop.f32.mrf.mxu0
    %v1003 = vadd.f32 %v954, %v1002
    %v1004 = vpop.f32.mrf.mxu0
    %v1005 = vadd.f32 %v956, %v1004
    %1006 = vdwg.mxu0
    %1007 = vmatpush.bf16.msra.mxu0 %v656
    %1008 = vmatpush.bf16.msra.mxu0 %v655
    %1009 = vmatpush.bf16.msra.mxu0 %v654
    %1010 = vmatpush.bf16.msra.mxu0 %v653
    %1011 = vmatpush.bf16.msra.mxu0 %v652
    %1012 = vmatpush.bf16.msra.mxu0 %v651
    %1013 = vmatpush.bf16.msra.mxu0 %v650
    %1014 = vmatpush.bf16.msra.mxu0 %v649
    %1015 = vmatmul.bf16.gmra.mxu0 %v211
    %v1016 = vpop.f32.mrf.mxu0
    %v1017 = vadd.f32 %v968, %v1016
    %v1018 = vpop.f32.mrf.mxu0
    %v1019 = vadd.f32 %v970, %v1018
    %1020 = vmatmul.bf16.gmra.mxu0 %v218
    %v1021 = vpop.f32.mrf.mxu0
    %v1022 = vadd.f32 %v973, %v1021
    %v1023 = vpop.f32.mrf.mxu0
    %v1024 = vadd.f32 %v975, %v1023
    %1025 = vmatmul.bf16.gmra.mxu0 %v225
    %v1026 = vpop.f32.mrf.mxu0
    %v1027 = vadd.f32 %v978, %v1026
    %v1028 = vpop.f32.mrf.mxu0
    %v1029 = vadd.f32 %v980, %v1028
    %1030 = vmatmul.bf16.gmra.mxu0 %v232
    %v1031 = vpop.f32.mrf.mxu0
    %v1032 = vadd.f32 %v983, %v1031
    %v1033 = vpop.f32.mrf.mxu0
    %v1034 = vadd.f32 %v985, %v1033
    %1035 = vmatmul.bf16.gmra.mxu0 %v239
    %v1036 = vpop.f32.mrf.mxu0
    %v1037 = vadd.f32 %v988, %v1036
    %v1038 = vpop.f32.mrf.mxu0
    %v1039 = vadd.f32 %v990, %v1038
    %1040 = vmatmul.bf16.gmra.mxu0 %v246
    %v1041 = vpop.f32.mrf.mxu0
    %v1042 = vadd.f32 %v993, %v1041
    %v1043 = vpop.f32.mrf.mxu0
    %v1044 = vadd.f32 %v995, %v1043
    %1045 = vmatmul.bf16.gmra.mxu0 %v253
    %v1046 = vpop.f32.mrf.mxu0
    %v1047 = vadd.f32 %v998, %v1046
    %v1048 = vpop.f32.mrf.mxu0
    %v1049 = vadd.f32 %v1000, %v1048
    %1050 = vmatmul.bf16.gmra.mxu0 %v260
    %v1051 = vpop.f32.mrf.mxu0
    %v1052 = vadd.f32 %v1003, %v1051
    %v1053 = vpop.f32.mrf.mxu0
    %v1054 = vadd.f32 %v1005, %v1053
    %1055 = vdwg.mxu0
    %v1056 = vmax.f32 %v1017, 0.0
    %v1057 = vmax.f32 %v1019, 0.0
    %v1058 = vmax.f32 %v1022, 0.0
    %v1059 = vmax.f32 %v1024, 0.0
    %v1060 = vmax.f32 %v1027, 0.0
    %v1061 = vmax.f32 %v1029, 0.0
    %v1062 = vmax.f32 %v1032, 0.0
    %v1063 = vmax.f32 %v1034, 0.0
    %v1064 = vmax.f32 %v1037, 0.0
    %v1065 = vmax.f32 %v1039, 0.0
    %v1066 = vmax.f32 %v1042, 0.0
    %v1067 = vmax.f32 %v1044, 0.0
    %v1068 = vmax.f32 %v1047, 0.0
    %v1069 = vmax.f32 %v1049, 0.0
    %v1070 = vmax.f32 %v1052, 0.0
    %v1071 = vmax.f32 %v1054, 0.0
    %v1072 = vpack.c.bf16 %v1057, %v1056
    %v1073 = vpack.c.bf16 %v1059, %v1058
    %v1074 = vpack.c.bf16 %v1061, %v1060
    %v1075 = vpack.c.bf16 %v1063, %v1062
    %v1076 = vpack.c.bf16 %v1065, %v1064
    %v1077 = vpack.c.bf16 %v1067, %v1066
    %v1078 = vpack.c.bf16 %v1069, %v1068
    %v1079 = vpack.c.bf16 %v1071, %v1070
    %v1080 = vld [vmem:[#allocation7] sm:$0xf]
    %v1081 = vld [vmem:[#allocation7 + $0x4] sm:$0xf]
    %v1082 = vld [vmem:[#allocation7 + $0x8] sm:$0xf]
    %v1083 = vld [vmem:[#allocation7 + $0xc] sm:$0xf]
    %v1084 = vld [vmem:[#allocation7 + $0x10] sm:$0xf]
    %v1085 = vld [vmem:[#allocation7 + $0x14] sm:$0xf]
    %v1086 = vld [vmem:[#allocation7 + $0x18] sm:$0xf]
    %v1087 = vld [vmem:[#allocation7 + $0x1c] sm:$0xf]
    %v1088 = vld [vmem:[#allocation7 + $0x20] sm:$0xf]
    %v1089 = vld [vmem:[#allocation7 + $0x24] sm:$0xf]
    %v1090 = vld [vmem:[#allocation7 + $0x28] sm:$0xf]
    %v1091 = vld [vmem:[#allocation7 + $0x2c] sm:$0xf]
    %v1092 = vld [vmem:[#allocation7 + $0x30] sm:$0xf]
    %v1093 = vld [vmem:[#allocation7 + $0x34] sm:$0xf]
    %v1094 = vld [vmem:[#allocation7 + $0x38] sm:$0xf]
    %v1095 = vld [vmem:[#allocation7 + $0x3c] sm:$0xf]
    %v1096 = vld [vmem:[%s4] sm:$0x1]
    %v1098 = vperm.slane %v1096, 0
    %v1116 = vunpack.c.l.b16 %v1080
    %v1117 = vunpack.c.l.b16 %v1081
    %v1118 = vunpack.c.l.b16 %v1082
    %v1119 = vunpack.c.l.b16 %v1083
    %v1120 = vunpack.c.l.b16 %v1084
    %v1121 = vunpack.c.l.b16 %v1085
    %v1122 = vunpack.c.l.b16 %v1086
    %v1123 = vunpack.c.l.b16 %v1087
    %v1124 = vunpack.c.l.b16 %v1088
    %v1125 = vunpack.c.l.b16 %v1089
    %v1126 = vunpack.c.l.b16 %v1090
    %v1127 = vunpack.c.l.b16 %v1091
    %v1128 = vunpack.c.l.b16 %v1092
    %v1129 = vunpack.c.l.b16 %v1093
    %v1130 = vunpack.c.l.b16 %v1094
    %v1131 = vunpack.c.l.b16 %v1095
    %v1132 = vpack.c.b16 %v1117, %v1116
    %v1133 = vpack.c.b16 %v1119, %v1118
    %v1134 = vpack.c.b16 %v1121, %v1120
    %v1135 = vpack.c.b16 %v1123, %v1122
    %v1136 = vpack.c.b16 %v1125, %v1124
    %v1137 = vpack.c.b16 %v1127, %v1126
    %v1138 = vpack.c.b16 %v1129, %v1128
    %v1139 = vpack.c.b16 %v1131, %v1130
    %1148 = vmatpush.bf16.msra.mxu0 %v1139
    %1149 = vmatpush.bf16.msra.mxu0 %v1138
    %1150 = vmatpush.bf16.msra.mxu0 %v1137
    %1151 = vmatpush.bf16.msra.mxu0 %v1136
    %1152 = vmatpush.bf16.msra.mxu0 %v1135
    %1153 = vmatpush.bf16.msra.mxu0 %v1134
    %1154 = vmatpush.bf16.msra.mxu0 %v1133
    %1155 = vmatpush.bf16.msra.mxu0 %v1132
    %1156 = vmatmul.bf16.gmra.mxu0 %v1072
    %v1157 = vpop.f32.mrf.mxu0
    %v1158 = vadd.f32 %v1098, %v1157
    %v1159 = vpop.f32.mrf.mxu0
    %v1160 = vadd.f32 %v1098, %v1159
    %1161 = vmatmul.bf16.gmra.mxu0 %v1073
    %v1162 = vpop.f32.mrf.mxu0
    %v1163 = vadd.f32 %v1098, %v1162
    %v1164 = vpop.f32.mrf.mxu0
    %v1165 = vadd.f32 %v1098, %v1164
    %1166 = vmatmul.bf16.gmra.mxu0 %v1074
    %v1167 = vpop.f32.mrf.mxu0
    %v1168 = vadd.f32 %v1098, %v1167
    %v1169 = vpop.f32.mrf.mxu0
    %v1170 = vadd.f32 %v1098, %v1169
    %1171 = vmatmul.bf16.gmra.mxu0 %v1075
    %v1172 = vpop.f32.mrf.mxu0
    %v1173 = vadd.f32 %v1098, %v1172
    %v1174 = vpop.f32.mrf.mxu0
    %v1175 = vadd.f32 %v1098, %v1174
    %1176 = vmatmul.bf16.gmra.mxu0 %v1076
    %v1177 = vpop.f32.mrf.mxu0
    %v1178 = vadd.f32 %v1098, %v1177
    %v1179 = vpop.f32.mrf.mxu0
    %v1180 = vadd.f32 %v1098, %v1179
    %1181 = vmatmul.bf16.gmra.mxu0 %v1077
    %v1182 = vpop.f32.mrf.mxu0
    %v1183 = vadd.f32 %v1098, %v1182
    %v1184 = vpop.f32.mrf.mxu0
    %v1185 = vadd.f32 %v1098, %v1184
    %1186 = vmatmul.bf16.gmra.mxu0 %v1078
    %v1187 = vpop.f32.mrf.mxu0
    %v1188 = vadd.f32 %v1098, %v1187
    %v1189 = vpop.f32.mrf.mxu0
    %v1190 = vadd.f32 %v1098, %v1189
    %1191 = vmatmul.bf16.gmra.mxu0 %v1079
    %v1192 = vpop.f32.mrf.mxu0
    %v1193 = vadd.f32 %v1098, %v1192
    %v1194 = vpop.f32.mrf.mxu0
    %v1195 = vadd.f32 %v1098, %v1194
    %1196 = vdwg.mxu0
    %v1197 = vmax.f32 %v1158, 0.0
    %v1198 = vmax.f32 %v1160, 0.0
    %v1199 = vmax.f32 %v1163, 0.0
    %v1200 = vmax.f32 %v1165, 0.0
    %v1201 = vmax.f32 %v1168, 0.0
    %v1202 = vmax.f32 %v1170, 0.0
    %v1203 = vmax.f32 %v1173, 0.0
    %v1204 = vmax.f32 %v1175, 0.0
    %v1205 = vmax.f32 %v1178, 0.0
    %v1206 = vmax.f32 %v1180, 0.0
    %v1207 = vmax.f32 %v1183, 0.0
    %v1208 = vmax.f32 %v1185, 0.0
    %v1209 = vmax.f32 %v1188, 0.0
    %v1210 = vmax.f32 %v1190, 0.0
    %v1211 = vmax.f32 %v1193, 0.0
    %v1212 = vmax.f32 %v1195, 0.0
    %v1213 = vpack.c.bf16 %v1197, %v1197
    %v1214 = vpack.c.bf16 %v1198, %v1198
    %v1215 = vpack.c.bf16 %v1199, %v1199
    %v1216 = vpack.c.bf16 %v1200, %v1200
    %v1217 = vpack.c.bf16 %v1201, %v1201
    %v1218 = vpack.c.bf16 %v1202, %v1202
    %v1219 = vpack.c.bf16 %v1203, %v1203
    %v1220 = vpack.c.bf16 %v1204, %v1204
    %v1221 = vpack.c.bf16 %v1205, %v1205
    %v1222 = vpack.c.bf16 %v1206, %v1206
    %v1223 = vpack.c.bf16 %v1207, %v1207
    %v1224 = vpack.c.bf16 %v1208, %v1208
    %v1225 = vpack.c.bf16 %v1209, %v1209
    %v1226 = vpack.c.bf16 %v1210, %v1210
    %v1227 = vpack.c.bf16 %v1211, %v1211
    %v1228 = vpack.c.bf16 %v1212, %v1212
    %1229 = vst [vmem:[#allocation10] sm:$0xf] %v1213
    %1230 = vst [vmem:[#allocation10 + $0x4] sm:$0xf] %v1214
    %1231 = vst [vmem:[#allocation10 + $0x8] sm:$0xf] %v1215
    %1232 = vst [vmem:[#allocation10 + $0xc] sm:$0xf] %v1216
    %1233 = vst [vmem:[#allocation10 + $0x10] sm:$0xf] %v1217
    %1234 = vst [vmem:[#allocation10 + $0x14] sm:$0xf] %v1218
    %1235 = vst [vmem:[#allocation10 + $0x18] sm:$0xf] %v1219
    %1236 = vst [vmem:[#allocation10 + $0x1c] sm:$0xf] %v1220
    %1237 = vst [vmem:[#allocation10 + $0x20] sm:$0xf] %v1221
    %1238 = vst [vmem:[#allocation10 + $0x24] sm:$0xf] %v1222
    %1239 = vst [vmem:[#allocation10 + $0x28] sm:$0xf] %v1223
    %1240 = vst [vmem:[#allocation10 + $0x2c] sm:$0xf] %v1224
    %1241 = vst [vmem:[#allocation10 + $0x30] sm:$0xf] %v1225
    %1242 = vst [vmem:[#allocation10 + $0x34] sm:$0xf] %v1226
    %1243 = vst [vmem:[#allocation10 + $0x38] sm:$0xf] %v1227
    %1244 = vst [vmem:[#allocation10 + $0x3c] sm:$0xf] %v1228
    %v1245 = vld [vmem:[#allocation8] sm:$0xf]
    %v1246 = vld [vmem:[#allocation8 + $0x4] sm:$0xf]
    %v1247 = vld [vmem:[#allocation8 + $0x8] sm:$0xf]
    %v1248 = vld [vmem:[#allocation8 + $0xc] sm:$0xf]
    %v1249 = vld [vmem:[#allocation8 + $0x10] sm:$0xf]
    %v1250 = vld [vmem:[#allocation8 + $0x14] sm:$0xf]
    %v1251 = vld [vmem:[#allocation8 + $0x18] sm:$0xf]
    %v1252 = vld [vmem:[#allocation8 + $0x1c] sm:$0xf]
    %v1253 = vld [vmem:[#allocation8 + $0x20] sm:$0xf]
    %v1254 = vld [vmem:[#allocation8 + $0x24] sm:$0xf]
    %v1255 = vld [vmem:[#allocation8 + $0x28] sm:$0xf]
    %v1256 = vld [vmem:[#allocation8 + $0x2c] sm:$0xf]
    %v1257 = vld [vmem:[#allocation8 + $0x30] sm:$0xf]
    %v1258 = vld [vmem:[#allocation8 + $0x34] sm:$0xf]
    %v1259 = vld [vmem:[#allocation8 + $0x38] sm:$0xf]
    %v1260 = vld [vmem:[#allocation8 + $0x3c] sm:$0xf]
    %v1261 = vld [vmem:[%s6] sm:$0x1]
    %v1263 = vperm.slane %v1261, 0
    %v1281 = vunpack.c.l.b16 %v1213
    %v1282 = vunpack.c.l.b16 %v1214
    %v1283 = vunpack.c.l.b16 %v1215
    %v1284 = vunpack.c.l.b16 %v1216
    %v1285 = vunpack.c.l.b16 %v1217
    %v1286 = vunpack.c.l.b16 %v1218
    %v1287 = vunpack.c.l.b16 %v1219
    %v1288 = vunpack.c.l.b16 %v1220
    %v1289 = vunpack.c.l.b16 %v1221
    %v1290 = vunpack.c.l.b16 %v1222
    %v1291 = vunpack.c.l.b16 %v1223
    %v1292 = vunpack.c.l.b16 %v1224
    %v1293 = vunpack.c.l.b16 %v1225
    %v1294 = vunpack.c.l.b16 %v1226
    %v1295 = vunpack.c.l.b16 %v1227
    %v1296 = vunpack.c.l.b16 %v1228
    %v1297 = vpack.c.b16 %v1282, %v1281
    %v1298 = vpack.c.b16 %v1284, %v1283
    %v1299 = vpack.c.b16 %v1286, %v1285
    %v1300 = vpack.c.b16 %v1288, %v1287
    %v1301 = vpack.c.b16 %v1290, %v1289
    %v1302 = vpack.c.b16 %v1292, %v1291
    %v1303 = vpack.c.b16 %v1294, %v1293
    %v1304 = vpack.c.b16 %v1296, %v1295
    %v1329 = vunpack.c.l.b16 %v1245
    %v1330 = vunpack.c.l.b16 %v1246
    %v1331 = vunpack.c.l.b16 %v1247
    %v1332 = vunpack.c.l.b16 %v1248
    %v1333 = vunpack.c.l.b16 %v1249
    %v1334 = vunpack.c.l.b16 %v1250
    %v1335 = vunpack.c.l.b16 %v1251
    %v1336 = vunpack.c.l.b16 %v1252
    %v1337 = vunpack.c.l.b16 %v1253
    %v1338 = vunpack.c.l.b16 %v1254
    %v1339 = vunpack.c.l.b16 %v1255
    %v1340 = vunpack.c.l.b16 %v1256
    %v1341 = vunpack.c.l.b16 %v1257
    %v1342 = vunpack.c.l.b16 %v1258
    %v1343 = vunpack.c.l.b16 %v1259
    %v1344 = vunpack.c.l.b16 %v1260
    %v1345 = vpack.c.b16 %v1330, %v1329
    %v1346 = vpack.c.b16 %v1332, %v1331
    %v1347 = vpack.c.b16 %v1334, %v1333
    %v1348 = vpack.c.b16 %v1336, %v1335
    %v1349 = vpack.c.b16 %v1338, %v1337
    %v1350 = vpack.c.b16 %v1340, %v1339
    %v1351 = vpack.c.b16 %v1342, %v1341
    %v1352 = vpack.c.b16 %v1344, %v1343
    %1361 = vmatpush.bf16.msra.mxu0 %v1352
    %1362 = vmatpush.bf16.msra.mxu0 %v1351
    %1363 = vmatpush.bf16.msra.mxu0 %v1350
    %1364 = vmatpush.bf16.msra.mxu0 %v1349
    %1365 = vmatpush.bf16.msra.mxu0 %v1348
    %1366 = vmatpush.bf16.msra.mxu0 %v1347
    %1367 = vmatpush.bf16.msra.mxu0 %v1346
    %1368 = vmatpush.bf16.msra.mxu0 %v1345
    %1369 = vmatmul.bf16.gmra.mxu0 %v1297
    %v1370 = vpop.f32.mrf.mxu0
    %v1371 = vadd.f32 %v1263, %v1370
    %v1372 = vpop.f32.mrf.mxu0
    %v1373 = vadd.f32 %v1263, %v1372
    %1374 = vmatmul.bf16.gmra.mxu0 %v1298
    %v1375 = vpop.f32.mrf.mxu0
    %v1376 = vadd.f32 %v1263, %v1375
    %v1377 = vpop.f32.mrf.mxu0
    %v1378 = vadd.f32 %v1263, %v1377
    %1379 = vmatmul.bf16.gmra.mxu0 %v1299
    %v1380 = vpop.f32.mrf.mxu0
    %v1381 = vadd.f32 %v1263, %v1380
    %v1382 = vpop.f32.mrf.mxu0
    %v1383 = vadd.f32 %v1263, %v1382
    %1384 = vmatmul.bf16.gmra.mxu0 %v1300
    %v1385 = vpop.f32.mrf.mxu0
    %v1386 = vadd.f32 %v1263, %v1385
    %v1387 = vpop.f32.mrf.mxu0
    %v1388 = vadd.f32 %v1263, %v1387
    %1389 = vmatmul.bf16.gmra.mxu0 %v1301
    %v1390 = vpop.f32.mrf.mxu0
    %v1391 = vadd.f32 %v1263, %v1390
    %v1392 = vpop.f32.mrf.mxu0
    %v1393 = vadd.f32 %v1263, %v1392
    %1394 = vmatmul.bf16.gmra.mxu0 %v1302
    %v1395 = vpop.f32.mrf.mxu0
    %v1396 = vadd.f32 %v1263, %v1395
    %v1397 = vpop.f32.mrf.mxu0
    %v1398 = vadd.f32 %v1263, %v1397
    %1399 = vmatmul.bf16.gmra.mxu0 %v1303
    %v1400 = vpop.f32.mrf.mxu0
    %v1401 = vadd.f32 %v1263, %v1400
    %v1402 = vpop.f32.mrf.mxu0
    %v1403 = vadd.f32 %v1263, %v1402
    %1404 = vmatmul.bf16.gmra.mxu0 %v1304
    %v1405 = vpop.f32.mrf.mxu0
    %v1406 = vadd.f32 %v1263, %v1405
    %v1407 = vpop.f32.mrf.mxu0
    %v1408 = vadd.f32 %v1263, %v1407
    %1409 = vdwg.mxu0
    %1410 = vmax.xlane.f32.xlu0 %v1371
    %v1411 = vpop.xlane.xlu0 %1410
    %1412 = vmax.xlane.f32.xlu0 %v1373
    %v1413 = vpop.xlane.xlu0 %1412
    %1414 = vmax.xlane.f32.xlu0 %v1376
    %v1415 = vpop.xlane.xlu0 %1414
    %1416 = vmax.xlane.f32.xlu0 %v1378
    %v1417 = vpop.xlane.xlu0 %1416
    %1418 = vmax.xlane.f32.xlu0 %v1381
    %v1419 = vpop.xlane.xlu0 %1418
    %1420 = vmax.xlane.f32.xlu0 %v1383
    %v1421 = vpop.xlane.xlu0 %1420
    %1422 = vmax.xlane.f32.xlu0 %v1386
    %v1423 = vpop.xlane.xlu0 %1422
    %1424 = vmax.xlane.f32.xlu0 %v1388
    %v1425 = vpop.xlane.xlu0 %1424
    %1426 = vmax.xlane.f32.xlu0 %v1391
    %v1427 = vpop.xlane.xlu0 %1426
    %1428 = vmax.xlane.f32.xlu0 %v1393
    %v1429 = vpop.xlane.xlu0 %1428
    %1430 = vmax.xlane.f32.xlu0 %v1396
    %v1431 = vpop.xlane.xlu0 %1430
    %1432 = vmax.xlane.f32.xlu0 %v1398
    %v1433 = vpop.xlane.xlu0 %1432
    %1434 = vmax.xlane.f32.xlu0 %v1401
    %v1435 = vpop.xlane.xlu0 %1434
    %1436 = vmax.xlane.f32.xlu0 %v1403
    %v1437 = vpop.xlane.xlu0 %1436
    %1438 = vmax.xlane.f32.xlu0 %v1406
    %v1439 = vpop.xlane.xlu0 %1438
    %1440 = vmax.xlane.f32.xlu0 %v1408
    %v1441 = vpop.xlane.xlu0 %1440
    %v1442 = vsub.f32 %v1371, %v1411
    %v1443 = vsub.f32 %v1373, %v1413
    %v1444 = vsub.f32 %v1376, %v1415
    %v1445 = vsub.f32 %v1378, %v1417
    %v1446 = vsub.f32 %v1381, %v1419
    %v1447 = vsub.f32 %v1383, %v1421
    %v1448 = vsub.f32 %v1386, %v1423
    %v1449 = vsub.f32 %v1388, %v1425
    %v1450 = vsub.f32 %v1391, %v1427
    %v1451 = vsub.f32 %v1393, %v1429
    %v1452 = vsub.f32 %v1396, %v1431
    %v1453 = vsub.f32 %v1398, %v1433
    %v1454 = vsub.f32 %v1401, %v1435
    %v1455 = vsub.f32 %v1403, %v1437
    %v1456 = vsub.f32 %v1406, %v1439
    %v1457 = vsub.f32 %v1408, %v1441
    %v1458 = vmul.f32 %v1442, 1.442695
    %v1459 = vpow.pop %v1458
    %v1460 = vmul.f32 %v1443, 1.442695
    %v1461 = vpow.pop %v1460
    %v1462 = vmul.f32 %v1444, 1.442695
    %v1463 = vpow.pop %v1462
    %v1464 = vmul.f32 %v1445, 1.442695
    %v1465 = vpow.pop %v1464
    %v1466 = vmul.f32 %v1446, 1.442695
    %v1467 = vpow.pop %v1466
    %v1468 = vmul.f32 %v1447, 1.442695
    %v1469 = vpow.pop %v1468
    %v1470 = vmul.f32 %v1448, 1.442695
    %v1471 = vpow.pop %v1470
    %v1472 = vmul.f32 %v1449, 1.442695
    %v1473 = vpow.pop %v1472
    %v1474 = vmul.f32 %v1450, 1.442695
    %v1475 = vpow.pop %v1474
    %v1476 = vmul.f32 %v1451, 1.442695
    %v1477 = vpow.pop %v1476
    %v1478 = vmul.f32 %v1452, 1.442695
    %v1479 = vpow.pop %v1478
    %v1480 = vmul.f32 %v1453, 1.442695
    %v1481 = vpow.pop %v1480
    %v1482 = vmul.f32 %v1454, 1.442695
    %v1483 = vpow.pop %v1482
    %v1484 = vmul.f32 %v1455, 1.442695
    %v1485 = vpow.pop %v1484
    %v1486 = vmul.f32 %v1456, 1.442695
    %v1487 = vpow.pop %v1486
    %v1488 = vmul.f32 %v1457, 1.442695
    %v1489 = vpow.pop %v1488
    %1490 = vadd.xlane.f32.xlu0 %v1459
    %v1491 = vpop.xlane.xlu0 %1490
    %1492 = vadd.xlane.f32.xlu0 %v1461
    %v1493 = vpop.xlane.xlu0 %1492
    %1494 = vadd.xlane.f32.xlu0 %v1463
    %v1495 = vpop.xlane.xlu0 %1494
    %1496 = vadd.xlane.f32.xlu0 %v1465
    %v1497 = vpop.xlane.xlu0 %1496
    %1498 = vadd.xlane.f32.xlu0 %v1467
    %v1499 = vpop.xlane.xlu0 %1498
    %1500 = vadd.xlane.f32.xlu0 %v1469
    %v1501 = vpop.xlane.xlu0 %1500
    %1502 = vadd.xlane.f32.xlu0 %v1471
    %v1503 = vpop.xlane.xlu0 %1502
    %1504 = vadd.xlane.f32.xlu0 %v1473
    %v1505 = vpop.xlane.xlu0 %1504
    %1506 = vadd.xlane.f32.xlu0 %v1475
    %v1507 = vpop.xlane.xlu0 %1506
    %1508 = vadd.xlane.f32.xlu0 %v1477
    %v1509 = vpop.xlane.xlu0 %1508
    %1510 = vadd.xlane.f32.xlu0 %v1479
    %v1511 = vpop.xlane.xlu0 %1510
    %1512 = vadd.xlane.f32.xlu0 %v1481
    %v1513 = vpop.xlane.xlu0 %1512
    %1514 = vadd.xlane.f32.xlu0 %v1483
    %v1515 = vpop.xlane.xlu0 %1514
    %1516 = vadd.xlane.f32.xlu0 %v1485
    %v1517 = vpop.xlane.xlu0 %1516
    %1518 = vadd.xlane.f32.xlu0 %v1487
    %v1519 = vpop.xlane.xlu0 %1518
    %1520 = vadd.xlane.f32.xlu0 %v1489
    %v1521 = vpop.xlane.xlu0 %1520
    %v1522 = vlaneseq
    %v1523 = vand.u32 %v1522, 127
    %vm1524 = vcmp.eq.s32.totalorder %v1523, 0
    %v1525 = vsel %vm1524, -1e+30, %v1371
    %v1526 = vsel %vm1524, -1e+30, %v1373
    %v1527 = vsel %vm1524, -1e+30, %v1376
    %v1528 = vsel %vm1524, -1e+30, %v1378
    %v1529 = vsel %vm1524, -1e+30, %v1381
    %v1530 = vsel %vm1524, -1e+30, %v1383
    %v1531 = vsel %vm1524, -1e+30, %v1386
    %v1532 = vsel %vm1524, -1e+30, %v1388
    %v1533 = vsel %vm1524, -1e+30, %v1391
    %v1534 = vsel %vm1524, -1e+30, %v1393
    %v1535 = vsel %vm1524, -1e+30, %v1396
    %v1536 = vsel %vm1524, -1e+30, %v1398
    %v1537 = vsel %vm1524, -1e+30, %v1401
    %v1538 = vsel %vm1524, -1e+30, %v1403
    %v1539 = vsel %vm1524, -1e+30, %v1406
    %v1540 = vsel %vm1524, -1e+30, %v1408
    %1541 = vmax.xlane.f32.xlu0 %v1525
    %v1542 = vpop.xlane.xlu0 %1541
    %1543 = vmax.xlane.f32.xlu0 %v1526
    %v1544 = vpop.xlane.xlu0 %1543
    %1545 = vmax.xlane.f32.xlu0 %v1527
    %v1546 = vpop.xlane.xlu0 %1545
    %1547 = vmax.xlane.f32.xlu0 %v1528
    %v1548 = vpop.xlane.xlu0 %1547
    %1549 = vmax.xlane.f32.xlu0 %v1529
    %v1550 = vpop.xlane.xlu0 %1549
    %1551 = vmax.xlane.f32.xlu0 %v1530
    %v1552 = vpop.xlane.xlu0 %1551
    %1553 = vmax.xlane.f32.xlu0 %v1531
    %v1554 = vpop.xlane.xlu0 %1553
    %1555 = vmax.xlane.f32.xlu0 %v1532
    %v1556 = vpop.xlane.xlu0 %1555
    %1557 = vmax.xlane.f32.xlu0 %v1533
    %v1558 = vpop.xlane.xlu0 %1557
    %1559 = vmax.xlane.f32.xlu0 %v1534
    %v1560 = vpop.xlane.xlu0 %1559
    %1561 = vmax.xlane.f32.xlu0 %v1535
    %v1562 = vpop.xlane.xlu0 %1561
    %1563 = vmax.xlane.f32.xlu0 %v1536
    %v1564 = vpop.xlane.xlu0 %1563
    %1565 = vmax.xlane.f32.xlu0 %v1537
    %v1566 = vpop.xlane.xlu0 %1565
    %1567 = vmax.xlane.f32.xlu0 %v1538
    %v1568 = vpop.xlane.xlu0 %1567
    %1569 = vmax.xlane.f32.xlu0 %v1539
    %v1570 = vpop.xlane.xlu0 %1569
    %1571 = vmax.xlane.f32.xlu0 %v1540
    %v1572 = vpop.xlane.xlu0 %1571
    %v1573 = vsub.f32 %v1542, %v1411
    %v1574 = vsub.f32 %v1544, %v1413
    %v1575 = vsub.f32 %v1546, %v1415
    %v1576 = vsub.f32 %v1548, %v1417
    %v1577 = vsub.f32 %v1550, %v1419
    %v1578 = vsub.f32 %v1552, %v1421
    %v1579 = vsub.f32 %v1554, %v1423
    %v1580 = vsub.f32 %v1556, %v1425
    %v1581 = vsub.f32 %v1558, %v1427
    %v1582 = vsub.f32 %v1560, %v1429
    %v1583 = vsub.f32 %v1562, %v1431
    %v1584 = vsub.f32 %v1564, %v1433
    %v1585 = vsub.f32 %v1566, %v1435
    %v1586 = vsub.f32 %v1568, %v1437
    %v1587 = vsub.f32 %v1570, %v1439
    %v1588 = vsub.f32 %v1572, %v1441
    %v1589 = vmul.f32 %v1573, 1.442695
    %v1590 = vpow.pop %v1589
    %v1591 = vmul.f32 %v1574, 1.442695
    %v1592 = vpow.pop %v1591
    %v1593 = vmul.f32 %v1575, 1.442695
    %v1594 = vpow.pop %v1593
    %v1595 = vmul.f32 %v1576, 1.442695
    %v1596 = vpow.pop %v1595
    %v1597 = vmul.f32 %v1577, 1.442695
    %v1598 = vpow.pop %v1597
    %v1599 = vmul.f32 %v1578, 1.442695
    %v1600 = vpow.pop %v1599
    %v1601 = vmul.f32 %v1579, 1.442695
    %v1602 = vpow.pop %v1601
    %v1603 = vmul.f32 %v1580, 1.442695
    %v1604 = vpow.pop %v1603
    %v1605 = vmul.f32 %v1581, 1.442695
    %v1606 = vpow.pop %v1605
    %v1607 = vmul.f32 %v1582, 1.442695
    %v1608 = vpow.pop %v1607
    %v1609 = vmul.f32 %v1583, 1.442695
    %v1610 = vpow.pop %v1609
    %v1611 = vmul.f32 %v1584, 1.442695
    %v1612 = vpow.pop %v1611
    %v1613 = vmul.f32 %v1585, 1.442695
    %v1614 = vpow.pop %v1613
    %v1615 = vmul.f32 %v1586, 1.442695
    %v1616 = vpow.pop %v1615
    %v1617 = vmul.f32 %v1587, 1.442695
    %v1618 = vpow.pop %v1617
    %v1619 = vmul.f32 %v1588, 1.442695
    %v1620 = vpow.pop %v1619
    %v1621 = vrcp.pop %v1491
    %v1622 = vrcp.pop %v1493
    %v1623 = vrcp.pop %v1495
    %v1624 = vrcp.pop %v1497
    %v1625 = vrcp.pop %v1499
    %v1626 = vrcp.pop %v1501
    %v1627 = vrcp.pop %v1503
    %v1628 = vrcp.pop %v1505
    %v1629 = vrcp.pop %v1507
    %v1630 = vrcp.pop %v1509
    %v1631 = vrcp.pop %v1511
    %v1632 = vrcp.pop %v1513
    %v1633 = vrcp.pop %v1515
    %v1634 = vrcp.pop %v1517
    %v1635 = vrcp.pop %v1519
    %v1636 = vrcp.pop %v1521
    %v1637 = vmul.f32 %v1590, %v1621
    %v1638 = vmul.f32 %v1592, %v1622
    %v1639 = vmul.f32 %v1594, %v1623
    %v1640 = vmul.f32 %v1596, %v1624
    %v1641 = vmul.f32 %v1598, %v1625
    %v1642 = vmul.f32 %v1600, %v1626
    %v1643 = vmul.f32 %v1602, %v1627
    %v1644 = vmul.f32 %v1604, %v1628
    %v1645 = vmul.f32 %v1606, %v1629
    %v1646 = vmul.f32 %v1608, %v1630
    %v1647 = vmul.f32 %v1610, %v1631
    %v1648 = vmul.f32 %v1612, %v1632
    %v1649 = vmul.f32 %v1614, %v1633
    %v1650 = vmul.f32 %v1616, %v1634
    %v1651 = vmul.f32 %v1618, %v1635
    %v1652 = vmul.f32 %v1620, %v1636
    %1653 = vxpose.xlu0.b32.start [1/16] %v1637, 128
    %1654 = vxpose.xlu0.b32.cont [2/16] %v1638, 128
    %1655 = vxpose.xlu0.b32.cont [3/16] %v1639, 128
    %1656 = vxpose.xlu0.b32.cont [4/16] %v1640, 128
    %1657 = vxpose.xlu0.b32.cont [5/16] %v1641, 128
    %1658 = vxpose.xlu0.b32.cont [6/16] %v1642, 128
    %1659 = vxpose.xlu0.b32.cont [7/16] %v1643, 128
    %1660 = vxpose.xlu0.b32.cont [8/16] %v1644, 128
    %1661 = vxpose.xlu0.b32.cont [9/16] %v1645, 128
    %1662 = vxpose.xlu0.b32.cont [10/16] %v1646, 128
    %1663 = vxpose.xlu0.b32.cont [11/16] %v1647, 128
    %1664 = vxpose.xlu0.b32.cont [12/16] %v1648, 128
    %1665 = vxpose.xlu0.b32.cont [13/16] %v1649, 128
    %1666 = vxpose.xlu0.b32.cont [14/16] %v1650, 128
    %1667 = vxpose.xlu0.b32.cont [15/16] %v1651, 128
    %1668 = vxpose.xlu0.b32.end [16/16] %v1652, 128
    %v1669 = vpop.trf.xlu0
    %v1670 = vpop.trf.xlu0
    %v1671 = vpop.trf.xlu0
    %v1672 = vpop.trf.xlu0
    %v1673 = vpop.trf.xlu0
    %v1674 = vpop.trf.xlu0
    %v1675 = vpop.trf.xlu0
    %v1676 = vpop.trf.xlu0
    %v1677 = vpop.trf.xlu0
    %v1678 = vpop.trf.xlu0
    %v1679 = vpop.trf.xlu0
    %v1680 = vpop.trf.xlu0
    %v1681 = vpop.trf.xlu0
    %v1682 = vpop.trf.xlu0
    %v1683 = vpop.trf.xlu0
    %v1684 = vpop.trf.xlu0
    %1685 = vst [vmem:[#allocation11] sm:$0x1] %v1669
    // Predicated region
    $region46: #{tpu_custom_call.1} parent=1 // pred_check
      _
    $region47: #{tpu_custom_call.1} parent=1 // pred_check_branch
      %1687 = sbr.rel (0) target = $region49
    $region48: #{tpu_custom_call.1} parent=1 // pred_region
      %1689 = vsyncadd [#allocation4], 0
      %s1690 = sshll.u32 [#allocation10], 4
      %s1691 = int_to_ptr.vmem [resolvable:$true] %s1690
      %s1692 = sshll.u32 %s7, 4
      %s1693 = int_to_ptr.hbm [resolvable:$true] %s1692
      %1698 = dma.vmem_to_hbm [thread:$0]  %s1691, 1024, %s1693, [#allocation4], 64, 64, 4
    $region49: #{tpu_custom_call.1} parent=1 // pred_fallthru
      _
    // Predicated region
    $region50: #{tpu_custom_call.1} parent=1 // pred_check
      _
    $region51: #{tpu_custom_call.1} parent=1 // pred_check_branch
      %1700 = sbr.rel (0) target = $region53
    $region52: #{tpu_custom_call.1} parent=1 // pred_region
      %1702 = vsyncadd [#allocation12], 0
      %s1704 = sshll.u32 [#allocation11], 4
      %s1705 = int_to_ptr.vmem [resolvable:$true] %s1704
      %s1706 = sshll.u32 %s8, 4
      %s1707 = int_to_ptr.hbm [resolvable:$true] %s1706
      %1709 = dma.vmem_to_hbm [thread:$0]  %s1705, 16, %s1707, [#allocation12]
    $region53: #{tpu_custom_call.1} parent=1 // pred_fallthru
      _
    // Predicated region
    $region54: #{tpu_custom_call.1} parent=1 // pred_check
      _
    $region55: #{tpu_custom_call.1} parent=1 // pred_check_branch
      %1711 = sbr.rel (0) target = $region57
    $region56: #{tpu_custom_call.1} parent=1 // pred_region
      %1713 = dma.done [#allocation4], 1024
    $region57: #{tpu_custom_call.1} parent=1 // pred_fallthru
      _
    // Predicated region
    $region58: #{tpu_custom_call.1} parent=1 // pred_check
      _
    $region59: #{tpu_custom_call.1} parent=1 // pred_check_branch
      %1715 = sbr.rel (0) target = $region61
    $region60: #{tpu_custom_call.1} parent=1 // pred_region
      %1717 = dma.done [#allocation12], 16
    $region61: #{tpu_custom_call.1} parent=1 // pred_fallthru
      _
    %1718 = vsyncpa [#allocation3], 1
    %1719 = vsyncpa [#allocation6], 1
    %1720 = vsyncpa [#allocation9], 1
    %1721 = vsyncpa [#allocation4], 1
    %1722 = vsyncpa [#allocation12], 1

</llo_original>
